<compile_context>
chip_gen: v6e
topology: v6e:2x2x1
jax: 0.10.0
libtpu: 0.0.40
codegen_flags: <defaults>
</compile_context>

<pallas_src>
import jax
import jax.numpy as jnp
from jax.experimental import pallas as pl
from jax.experimental.pallas import tpu as pltpu

# ---------------- model hyper-parameters (small, consistent with module) ----
F = 32            # input_size
HID = 64          # hidden_size
N_HIDDEN = 3      # hidden_layers
N_RBF = 6
CUTOFF = 6.0
EXP_A, EXP_B = 75.9645, 2.7124   # exp_coef
MIN_R = 1.7

N_NODES = 8
N_EDGES = 16
N_GRAPHS = 4      # demo batch (grid axis)

BCAST = max(N_NODES, N_EDGES)    # sublane pre-broadcast factor for the V slab

# ---- W slab row offsets (single packed weight slab, all blocks (rows, HID)) --
_SW1 = 0                      # site layer 1      (F,   HID)
_SW2 = _SW1 + F               # site layer 2      (HID, HID)
_SW3 = _SW2 + HID             # site layer 3      (HID, HID)
_IW0A = _SW3 + HID            # int layer-1 x0    (F,   HID)
_IW0B = _IW0A + F             # int layer-1 x1    (F,   HID)
_IW0C = _IW0B + F             # int layer-1 RBF   (HID, HID)  rows >= N_RBF are 0
_IW2 = _IW0C + HID            # int layer 2       (HID, HID)
_IW3 = _IW2 + HID             # int layer 3       (HID, HID)
W_ROWS = _IW3 + HID           # 416

# ---- V slab block indices (each block is BCAST pre-broadcast rows x HID) -----
_SB1, _SB2, _SB3, _SWO, _SBO = 0, 1, 2, 3, 4       # site biases, out row, out bias(lane0)
_IB1, _IB2, _IB3, _IWO, _IBO = 5, 6, 7, 8, 9       # interaction biases, out row, out bias
_MU, _GAMMA = 10, 11                                # RBF centers / precisions (lane-padded)
V_ROWS = 12 * BCAST           # 192


# ---------------- fused kernel (one grid step = one graph) -------------------
def _fused_kernel(x_ref, e_ref, d_ref, W_ref, V_ref, out_ref):
    def vblk(i, rows):
        # pre-broadcast block: rows are identical -> plain VPU add, no XLU bcast
        return V_ref[i * BCAST:i * BCAST + rows, :]

    x = x_ref[...]                                                   # (N, F)
    d = d_ref[...]                                                   # (E, 1)
    ep = e_ref[...]                                                  # (E, 2) int32

    # ---------- site-energy MLP (BatchNorm folded into W/b on host) ----------
    h = jnp.dot(x, W_ref[_SW1:_SW1 + F, :], preferred_element_type=jnp.float32) + vblk(_SB1, N_NODES)
    h = h * jax.nn.sigmoid(h)                                        # SiLU
    h = jnp.dot(h, W_ref[_SW2:_SW2 + HID, :], preferred_element_type=jnp.float32) + vblk(_SB2, N_NODES)
    h = h * jax.nn.sigmoid(h)
    h = jnp.dot(h, W_ref[_SW3:_SW3 + HID, :], preferred_element_type=jnp.float32) + vblk(_SB3, N_NODES)
    h = h * jax.nn.sigmoid(h)
    # final Linear(H,1) as VPU multiply + lane reduction; output bias sits in
    # lane 0 of its block so the reduction picks it up exactly once.
    out_ref[0:N_NODES, :] = jnp.sum(h * vblk(_SWO, N_NODES) + vblk(_SBO, N_NODES),
                                    axis=-1, keepdims=True)          # (N, 1)

    # ---------- interaction first layer: per-node matmuls + one-hot gather ----
    a = jnp.dot(x, W_ref[_IW0A:_IW0A + F, :], preferred_element_type=jnp.float32)   # (N, H)
    b = jnp.dot(x, W_ref[_IW0B:_IW0B + F, :], preferred_element_type=jnp.float32)   # (N, H)
    ab = jnp.concatenate([a, b], axis=0)                             # (2N, H)
    e0 = ep[:, 0:1]                                                  # (E, 1)
    e1 = ep[:, 1:2]                                                  # (E, 1)
    col = jax.lax.broadcasted_iota(jnp.int32, (N_EDGES, 2 * N_NODES), 1)
    oh = jnp.logical_or(col == e0, col == e1 + N_NODES).astype(jnp.float32)          # (E, 2N)
    gath = jnp.dot(oh, ab, preferred_element_type=jnp.float32)       # (E, H) = x0@W0a + x1@W0b

    # ---------- Gaussian RBF (lane-padded to HID; padded lanes masked to 0) ---
    mu_b = vblk(_MU, N_EDGES)                                        # (E, HID)
    ga_b = vblk(_GAMMA, N_EDGES)                                     # (E, HID)
    lane = jax.lax.broadcasted_iota(jnp.int32, (N_EDGES, HID), 1)
    d_emb = jnp.where(lane < N_RBF, jnp.exp(-ga_b * (d - mu_b) ** 2), 0.0)

    h = (gath
         + jnp.dot(d_emb, W_ref[_IW0C:_IW0C + HID, :], preferred_element_type=jnp.float32)
         + vblk(_IB1, N_EDGES))
    h = h * jax.nn.sigmoid(h)
    h = jnp.dot(h, W_ref[_IW2:_IW2 + HID, :], preferred_element_type=jnp.float32) + vblk(_IB2, N_EDGES)
    h = h * jax.nn.sigmoid(h)
    h = jnp.dot(h, W_ref[_IW3:_IW3 + HID, :], preferred_element_type=jnp.float32) + vblk(_IB3, N_EDGES)
    h = h * jax.nn.sigmoid(h)
    e_mlp = jnp.sum(h * vblk(_IWO, N_EDGES) + vblk(_IBO, N_EDGES), axis=-1, keepdims=True)

    # physical repulsion term (gate matches the PyTorch source: y * (r > min_r))
    e_phys = EXP_A * jnp.exp(-EXP_B * d) * (d > MIN_R).astype(jnp.float32)
    out_ref[N_NODES:N_NODES + N_EDGES, :] = e_mlp + e_phys           # (E, 1)


# ---------------- wrapper -----------------------------------------------------
@jax.jit
def phys_interaction_net_forward(x, e, d, W_slab, V_slab):
    """x: (G,N,F) f32; e: (G,2,E) int edge indices; d: (G,E,1) f32 distances."""
    G = x.shape[0]
    e_pairs = jnp.swapaxes(e, 1, 2).astype(jnp.int32)                # (G, E, 2): one input array

    flops = 2 * G * (
        N_NODES * (F * HID + 2 * HID * HID)          # site MLP
        + 2 * N_NODES * F * HID                      # per-node A, B
        + N_EDGES * (2 * N_NODES * HID               # one-hot gather matmul
                     + HID * HID                     # rbf @ W0c (lane-padded)
                     + 2 * HID * HID)                # interaction hidden layers
        + (N_NODES + N_EDGES) * HID)                 # output-row reductions
    transcendentals = G * (3 * (N_NODES + N_EDGES) * HID + N_EDGES * HID + N_EDGES)
    bytes_accessed = 4 * (W_slab.size + V_slab.size
                          + G * (N_NODES * F + 3 * N_EDGES + N_NODES + N_EDGES))

    # Blocked specs place every block in VMEM (no ANY ambiguity); weight/bias
    # slabs use a constant index_map so they stay resident across grid steps.
    out = pl.pallas_call(
        _fused_kernel,
        grid=(G,),
        in_specs=[
            pl.BlockSpec((None, N_NODES, F), lambda g: (g, 0, 0)),
            pl.BlockSpec((None, N_EDGES, 2), lambda g: (g, 0, 0)),
            pl.BlockSpec((None, N_EDGES, 1), lambda g: (g, 0, 0)),
            pl.BlockSpec((W_ROWS, HID), lambda g: (0, 0)),
            pl.BlockSpec((V_ROWS, HID), lambda g: (0, 0)),
        ],
        out_specs=pl.BlockSpec((None, N_NODES + N_EDGES, 1), lambda g: (g, 0, 0)),
        out_shape=jax.ShapeDtypeStruct((G, N_NODES + N_EDGES, 1), jnp.float32),
        compiler_params=pltpu.CompilerParams(dimension_semantics=("parallel",)),
        cost_estimate=pl.CostEstimate(flops=flops, transcendentals=transcendentals,
                                      bytes_accessed=bytes_accessed),
    )(x, e_pairs, d, W_slab, V_slab)
    return out[:, :N_NODES, :], out[:, N_NODES:, :]


# ---------------- host-side param folding / packing ---------------------------
def _fold_bn(params, n_hidden):
    """Fold inference BatchNorm affine into the Linear: W' = W*s, b' = b*s + t."""
    Ws, bs = [], []
    idx = 0
    for _ in range(n_hidden):
        W, b, s, t = params[idx:idx + 4]
        idx += 4
        Ws.append(W * s)
        bs.append(b * s + t)
    return Ws, bs, params[idx], params[idx + 1]


def pack_params(site_params, int_params, mu, gamma):
    """Pack BOTH MLPs + RBF params into one weight slab and one bias/aux slab."""
    assert N_RBF <= HID
    sWs, sbs, sWout, sbout = _fold_bn(site_params, N_HIDDEN)
    iWs, ibs, iWout, ibout = _fold_bn(int_params, N_HIDDEN)

    iW1 = iWs[0]                                               # (2F + N_RBF, HID)
    W0c = jnp.zeros((HID, HID), jnp.float32).at[:N_RBF].set(iW1[2 * F:])
    W_slab = jnp.concatenate(
        [sWs[0], sWs[1], sWs[2], iW1[:F], iW1[F:2 * F], W0c, iWs[1], iWs[2]], axis=0)

    def bias_blk(b):                      # (1, HID) -> (BCAST, HID)
        return jnp.broadcast_to(b, (BCAST, HID))

    def row_blk(w_out):                   # (HID, 1) out weight -> broadcast row
        return jnp.broadcast_to(w_out.reshape(1, HID), (BCAST, HID))

    def lane0_blk(scalar):                # output bias in lane 0, zeros elsewhere
        r = jnp.zeros((1, HID), jnp.float32).at[0, 0].set(scalar)
        return jnp.broadcast_to(r, (BCAST, HID))

    def rbf_blk(v):                       # (1, N_RBF) -> lane-pad to HID, broadcast
        r = jnp.zeros((1, HID), jnp.float32).at[0, :N_RBF].set(v.reshape(-1))
        return jnp.broadcast_to(r, (BCAST, HID))

    V_slab = jnp.concatenate([
        bias_blk(sbs[0]), bias_blk(sbs[1]), bias_blk(sbs[2]),
        row_blk(sWout), lane0_blk(sbout[0, 0]),
        bias_blk(ibs[0]), bias_blk(ibs[1]), bias_blk(ibs[2]),
        row_blk(iWout), lane0_blk(ibout[0, 0]),
        rbf_blk(mu), rbf_blk(gamma),
    ], axis=0)

    assert W_slab.shape == (W_ROWS, HID) and V_slab.shape == (V_ROWS, HID)
    return W_slab, V_slab


# ---------------- deterministic parameter init (unfolded form) ----------------
def init_mlp_params(key, in_size, hidden_size, n_hidden):
    params = []
    cur = in_size
    for _ in range(n_hidden):
        key, k1, k2, k3, k4 = jax.random.split(key, 5)
        W = jax.random.normal(k1, (cur, hidden_size), jnp.float32) / jnp.sqrt(jnp.float32(cur))
        b = jax.random.normal(k2, (1, hidden_size), jnp.float32) * 0.01
        # BatchNorm1d (inference): scale = gamma/sqrt(var+eps), shift = beta - mean*scale
        scale = 1.0 + 0.1 * jax.random.normal(k3, (1, hidden_size), jnp.float32)
        shift = 0.1 * jax.random.normal(k4, (1, hidden_size), jnp.float32)
        params += [W, b, scale, shift]
        cur = hidden_size
    key, k1, k2 = jax.random.split(key, 3)
    Wout = jax.random.normal(k1, (cur, 1), jnp.float32) / jnp.sqrt(jnp.float32(cur))
    bout = jax.random.normal(k2, (1, 1), jnp.float32) * 0.01
    params += [Wout, bout]
    return params


# ---------------- pure-JAX reference (unfolded params, with concat) -----------
def _mlp_ref(h, params, n_hidden):
    idx = 0
    for _ in range(n_hidden):
        W, b, s, t = params[idx:idx + 4]
        idx += 4
        h = h @ W + b
        h = h * s + t
        h = h * jax.nn.sigmoid(h)
    return h @ params[idx] + params[idx + 1]


def forward_ref(x, e, d, site_params, int_params, mu, gamma):
    e_site = _mlp_ref(x, site_params, N_HIDDEN)
    d_emb = jnp.exp(-gamma * (d - mu) ** 2)
    x_int = jnp.concatenate([x[e[0]], x[e[1]], d_emb], axis=1)
    e_phys = EXP_A * jnp.exp(-EXP_B * d) * (d > MIN_R).astype(d.dtype)
    e_int = _mlp_ref(x_int, int_params, N_HIDDEN) + e_phys
    return e_site, e_int


# ---------------- main ---------------------------------------------------------
if __name__ == "__main__":
    key = jax.random.PRNGKey(0)
    k_x, k_e, k_d, k_sp, k_ip = jax.random.split(key, 5)

    G = N_GRAPHS
    x = jax.random.normal(k_x, (G, N_NODES, F), jnp.float32)
    e = jax.random.randint(k_e, (G, 2, N_EDGES), 0, N_NODES, dtype=jnp.int32)
    d = jax.random.uniform(k_d, (G, N_EDGES, 1), jnp.float32, minval=0.5, maxval=6.0)

    site_params = init_mlp_params(k_sp, F, HID, N_HIDDEN)
    int_params = init_mlp_params(k_ip, 2 * F + N_RBF, HID, N_HIDDEN)

    # trainable Gaussian RBF parameters (centers + precision)
    mu = jnp.linspace(0.0, CUTOFF, N_RBF, dtype=jnp.float32).reshape(1, N_RBF)
    width = CUTOFF / (N_RBF - 1)
    gamma = jnp.full((1, N_RBF), 0.5 / (width * width), jnp.float32)

    # host-side one-time packing: fold BN, build the two slabs, pad RBF lanes
    W_slab, V_slab = pack_params(site_params, int_params, mu, gamma)

    e_site, e_int = phys_interaction_net_forward(x, e, d, W_slab, V_slab)
    jax.block_until_ready((e_site, e_int))

    assert e_site.shape == (G, N_NODES, 1) and e_int.shape == (G, N_EDGES, 1)
    for g in range(G):
        es_ref, ei_ref = forward_ref(x[g], e[g], d[g], site_params, int_params, mu, gamma)
        assert jnp.allclose(e_site[g], es_ref, rtol=1e-3, atol=1e-3)
        assert jnp.allclose(e_int[g], ei_ref, rtol=1e-3, atol=1e-3)

    print("KERNEL_OK")
</pallas_src>

<mosaic_0001>
module attributes {stable_mosaic.version = 11 : i64} {
  func.func @_fused_kernel(%arg0: i32, %arg1: memref<1x8x32xf32, #tpu.memory_space<vmem>>, %arg2: memref<1x16x2xi32, #tpu.memory_space<vmem>>, %arg3: memref<1x16x1xf32, #tpu.memory_space<vmem>>, %arg4: memref<416x64xf32, #tpu.memory_space<vmem>>, %arg5: memref<192x64xf32, #tpu.memory_space<vmem>>, %arg6: memref<1x24x1xf32, #tpu.memory_space<vmem>>) attributes {dimension_semantics = [#tpu.dimension_semantics<parallel>], iteration_bounds = array<i64: 4>, scalar_prefetch = 0 : i64, scratch_operands = 0 : i64, tpu.core_type = #tpu.core_type<tc>, window_params = [{transform_indices = @transform_0, window_bounds = array<i64: 1, 8, 32>}, {transform_indices = @transform_1, window_bounds = array<i64: 1, 16, 2>}, {transform_indices = @transform_2, window_bounds = array<i64: 1, 16, 1>}, {pipeline_mode = #tpu.pipeline_mode<synchronous>, transform_indices = @transform_3, window_bounds = array<i64: 416, 64>}, {pipeline_mode = #tpu.pipeline_mode<synchronous>, transform_indices = @transform_4, window_bounds = array<i64: 192, 64>}, {transform_indices = @transform_5, window_bounds = array<i64: 1, 24, 1>}]} {
    %c0 = arith.constant 0 : index
    %c0_0 = arith.constant 0 : index
    %c0_1 = arith.constant 0 : index
    %0 = vector.load %arg1[%c0, %c0_0, %c0_1] : memref<1x8x32xf32, #tpu.memory_space<vmem>>, vector<1x8x32xf32>
    %1 = vector.shape_cast %0 : vector<1x8x32xf32> to vector<8x32xf32>
    %c0_2 = arith.constant 0 : index
    %c0_3 = arith.constant 0 : index
    %c0_4 = arith.constant 0 : index
    %2 = vector.load %arg3[%c0_2, %c0_3, %c0_4] : memref<1x16x1xf32, #tpu.memory_space<vmem>>, vector<1x16x1xf32>
    %3 = vector.shape_cast %2 : vector<1x16x1xf32> to vector<16x1xf32>
    %c0_5 = arith.constant 0 : index
    %c0_6 = arith.constant 0 : index
    %c0_7 = arith.constant 0 : index
    %4 = vector.load %arg2[%c0_5, %c0_6, %c0_7] : memref<1x16x2xi32, #tpu.memory_space<vmem>>, vector<1x16x2xi32>
    %5 = vector.shape_cast %4 : vector<1x16x2xi32> to vector<16x2xi32>
    %c0_8 = arith.constant 0 : index
    %c0_9 = arith.constant 0 : index
    %6 = vector.load %arg4[%c0_8, %c0_9] : memref<416x64xf32, #tpu.memory_space<vmem>>, vector<32x64xf32>
    %cst = arith.constant dense<0.000000e+00> : vector<8x64xf32>
    %7 = tpu.matmul %1, %6, %cst {dimension_numbers = #tpu.dot_dimension_numbers<[1], [0], [0], [1], [0, 0, 1, 1], [], []>} : vector<8x32xf32>, vector<32x64xf32>, vector<8x64xf32> -> vector<8x64xf32>
    %c0_10 = arith.constant 0 : index
    %c0_11 = arith.constant 0 : index
    %8 = vector.load %arg5[%c0_10, %c0_11] : memref<192x64xf32, #tpu.memory_space<vmem>>, vector<8x64xf32>
    %9 = arith.addf %7, %8 : vector<8x64xf32>
    %10 = arith.negf %9 : vector<8x64xf32>
    %11 = math.exp %10 : vector<8x64xf32>
    %cst_12 = arith.constant 1.000000e+00 : f32
    %12 = vector.broadcast %cst_12 : f32 to vector<8x64xf32>
    %13 = arith.addf %12, %11 : vector<8x64xf32>
    %14 = arith.divf %12, %13 : vector<8x64xf32>
    %15 = arith.mulf %9, %14 : vector<8x64xf32>
    %c32 = arith.constant 32 : index
    %c0_13 = arith.constant 0 : index
    %16 = vector.load %arg4[%c32, %c0_13] : memref<416x64xf32, #tpu.memory_space<vmem>>, vector<64x64xf32>
    %cst_14 = arith.constant dense<0.000000e+00> : vector<8x64xf32>
    %17 = tpu.matmul %15, %16, %cst_14 {dimension_numbers = #tpu.dot_dimension_numbers<[1], [0], [0], [1], [0, 0, 1, 1], [], []>} : vector<8x64xf32>, vector<64x64xf32>, vector<8x64xf32> -> vector<8x64xf32>
    %c16 = arith.constant 16 : index
    %c0_15 = arith.constant 0 : index
    %18 = vector.load %arg5[%c16, %c0_15] : memref<192x64xf32, #tpu.memory_space<vmem>>, vector<8x64xf32>
    %19 = arith.addf %17, %18 : vector<8x64xf32>
    %20 = arith.negf %19 : vector<8x64xf32>
    %21 = math.exp %20 : vector<8x64xf32>
    %cst_16 = arith.constant 1.000000e+00 : f32
    %22 = vector.broadcast %cst_16 : f32 to vector<8x64xf32>
    %23 = arith.addf %22, %21 : vector<8x64xf32>
    %24 = arith.divf %22, %23 : vector<8x64xf32>
    %25 = arith.mulf %19, %24 : vector<8x64xf32>
    %c96 = arith.constant 96 : index
    %c0_17 = arith.constant 0 : index
    %26 = vector.load %arg4[%c96, %c0_17] : memref<416x64xf32, #tpu.memory_space<vmem>>, vector<64x64xf32>
    %cst_18 = arith.constant dense<0.000000e+00> : vector<8x64xf32>
    %27 = tpu.matmul %25, %26, %cst_18 {dimension_numbers = #tpu.dot_dimension_numbers<[1], [0], [0], [1], [0, 0, 1, 1], [], []>} : vector<8x64xf32>, vector<64x64xf32>, vector<8x64xf32> -> vector<8x64xf32>
    %c32_19 = arith.constant 32 : index
    %c0_20 = arith.constant 0 : index
    %28 = vector.load %arg5[%c32_19, %c0_20] : memref<192x64xf32, #tpu.memory_space<vmem>>, vector<8x64xf32>
    %29 = arith.addf %27, %28 : vector<8x64xf32>
    %30 = arith.negf %29 : vector<8x64xf32>
    %31 = math.exp %30 : vector<8x64xf32>
    %cst_21 = arith.constant 1.000000e+00 : f32
    %32 = vector.broadcast %cst_21 : f32 to vector<8x64xf32>
    %33 = arith.addf %32, %31 : vector<8x64xf32>
    %34 = arith.divf %32, %33 : vector<8x64xf32>
    %35 = arith.mulf %29, %34 : vector<8x64xf32>
    %c48 = arith.constant 48 : index
    %c0_22 = arith.constant 0 : index
    %36 = vector.load %arg5[%c48, %c0_22] : memref<192x64xf32, #tpu.memory_space<vmem>>, vector<8x64xf32>
    %37 = arith.mulf %35, %36 : vector<8x64xf32>
    %c64 = arith.constant 64 : index
    %c0_23 = arith.constant 0 : index
    %38 = vector.load %arg5[%c64, %c0_23] : memref<192x64xf32, #tpu.memory_space<vmem>>, vector<8x64xf32>
    %39 = arith.addf %37, %38 : vector<8x64xf32>
    %cst_24 = arith.constant dense<0.000000e+00> : vector<8xf32>
    %40 = vector.multi_reduction <add>, %39, %cst_24 [1] : vector<8x64xf32> to vector<8xf32>
    %41 = vector.shape_cast %40 : vector<8xf32> to vector<8x1xf32>
    %c0_25 = arith.constant 0 : index
    %c0_26 = arith.constant 0 : index
    %c0_27 = arith.constant 0 : index
    %42 = vector.load %arg6[%c0_25, %c0_26, %c0_27] : memref<1x24x1xf32, #tpu.memory_space<vmem>>, vector<1x8x1xf32>
    %43 = vector.shape_cast %42 : vector<1x8x1xf32> to vector<8x1xf32>
    %44 = vector.shape_cast %41 : vector<8x1xf32> to vector<1x8x1xf32>
    tpu.vector_store %arg6[%c0_25, %c0_26, %c0_27], %44 {strides = array<i32>} : memref<1x24x1xf32, #tpu.memory_space<vmem>>, vector<1x8x1xf32>,
    %c160 = arith.constant 160 : index
    %c0_28 = arith.constant 0 : index
    %45 = vector.load %arg4[%c160, %c0_28] : memref<416x64xf32, #tpu.memory_space<vmem>>, vector<32x64xf32>
    %cst_29 = arith.constant dense<0.000000e+00> : vector<8x64xf32>
    %46 = tpu.matmul %1, %45, %cst_29 {dimension_numbers = #tpu.dot_dimension_numbers<[1], [0], [0], [1], [0, 0, 1, 1], [], []>} : vector<8x32xf32>, vector<32x64xf32>, vector<8x64xf32> -> vector<8x64xf32>
    %c192 = arith.constant 192 : index
    %c0_30 = arith.constant 0 : index
    %47 = vector.load %arg4[%c192, %c0_30] : memref<416x64xf32, #tpu.memory_space<vmem>>, vector<32x64xf32>
    %cst_31 = arith.constant dense<0.000000e+00> : vector<8x64xf32>
    %48 = tpu.matmul %1, %47, %cst_31 {dimension_numbers = #tpu.dot_dimension_numbers<[1], [0], [0], [1], [0, 0, 1, 1], [], []>} : vector<8x32xf32>, vector<32x64xf32>, vector<8x64xf32> -> vector<8x64xf32>
    %49 = tpu.concatenate %46, %48 in 0 : vector<8x64xf32>, vector<8x64xf32> -> vector<16x64xf32>
    %50 = vector.extract_strided_slice %5 {offsets = [0, 0], sizes = [16, 1], strides = [1, 1]} : vector<16x2xi32> to vector<16x1xi32>
    %51 = vector.extract_strided_slice %5 {offsets = [0, 1], sizes = [16, 1], strides = [1, 1]} : vector<16x2xi32> to vector<16x1xi32>
    %52 = tpu.iota {dimensions = array<i32: 1>} : vector<16x16xi32>
    %53 = vector.broadcast %50 : vector<16x1xi32> to vector<16x16xi32>
    %54 = arith.cmpi eq, %52, %53 : vector<16x16xi32>
    %c8_i32 = arith.constant 8 : i32
    %55 = vector.broadcast %c8_i32 : i32 to vector<16x1xi32>
    %56 = arith.addi %51, %55 : vector<16x1xi32>
    %57 = vector.broadcast %56 : vector<16x1xi32> to vector<16x16xi32>
    %58 = arith.cmpi eq, %52, %57 : vector<16x16xi32>
    %59 = arith.ori %54, %58 : vector<16x16xi1>
    %60 = arith.extui %59 : vector<16x16xi1> to vector<16x16xi32>
    %61 = arith.sitofp %60 : vector<16x16xi32> to vector<16x16xf32>
    %cst_32 = arith.constant dense<0.000000e+00> : vector<16x64xf32>
    %62 = tpu.matmul %61, %49, %cst_32 {dimension_numbers = #tpu.dot_dimension_numbers<[1], [0], [0], [1], [0, 0, 1, 1], [], []>} : vector<16x16xf32>, vector<16x64xf32>, vector<16x64xf32> -> vector<16x64xf32>
    %c160_33 = arith.constant 160 : index
    %c0_34 = arith.constant 0 : index
    %63 = vector.load %arg5[%c160_33, %c0_34] : memref<192x64xf32, #tpu.memory_space<vmem>>, vector<16x64xf32>
    %c176 = arith.constant 176 : index
    %c0_35 = arith.constant 0 : index
    %64 = vector.load %arg5[%c176, %c0_35] : memref<192x64xf32, #tpu.memory_space<vmem>>, vector<16x64xf32>
    %65 = tpu.iota {dimensions = array<i32: 1>} : vector<16x64xi32>
    %c6_i32 = arith.constant 6 : i32
    %66 = vector.broadcast %c6_i32 : i32 to vector<16x64xi32>
    %67 = arith.cmpi slt, %65, %66 : vector<16x64xi32>
    %cst_36 = arith.constant 0.000000e+00 : f32
    %68 = vector.broadcast %cst_36 : f32 to vector<16x64xf32>
    %69 = arith.subf %68, %64 : vector<16x64xf32>
    %70 = vector.broadcast %3 : vector<16x1xf32> to vector<16x64xf32>
    %71 = arith.subf %70, %63 : vector<16x64xf32>
    %72 = arith.mulf %71, %71 : vector<16x64xf32>
    %73 = arith.mulf %69, %72 : vector<16x64xf32>
    %74 = math.exp %73 : vector<16x64xf32>
    %cst_37 = arith.constant 0.000000e+00 : f32
    %75 = vector.broadcast %cst_37 : f32 to vector<16x64xf32>
    %76 = arith.select %67, %74, %75 : vector<16x64xi1>, vector<16x64xf32>
    %c224 = arith.constant 224 : index
    %c0_38 = arith.constant 0 : index
    %77 = vector.load %arg4[%c224, %c0_38] : memref<416x64xf32, #tpu.memory_space<vmem>>, vector<64x64xf32>
    %cst_39 = arith.constant dense<0.000000e+00> : vector<16x64xf32>
    %78 = tpu.matmul %76, %77, %cst_39 {dimension_numbers = #tpu.dot_dimension_numbers<[1], [0], [0], [1], [0, 0, 1, 1], [], []>} : vector<16x64xf32>, vector<64x64xf32>, vector<16x64xf32> -> vector<16x64xf32>
    %79 = arith.addf %62, %78 : vector<16x64xf32>
    %c80 = arith.constant 80 : index
    %c0_40 = arith.constant 0 : index
    %80 = vector.load %arg5[%c80, %c0_40] : memref<192x64xf32, #tpu.memory_space<vmem>>, vector<16x64xf32>
    %81 = arith.addf %79, %80 : vector<16x64xf32>
    %82 = arith.negf %81 : vector<16x64xf32>
    %83 = math.exp %82 : vector<16x64xf32>
    %cst_41 = arith.constant 1.000000e+00 : f32
    %84 = vector.broadcast %cst_41 : f32 to vector<16x64xf32>
    %85 = arith.addf %84, %83 : vector<16x64xf32>
    %86 = arith.divf %84, %85 : vector<16x64xf32>
    %87 = arith.mulf %81, %86 : vector<16x64xf32>
    %c288 = arith.constant 288 : index
    %c0_42 = arith.constant 0 : index
    %88 = vector.load %arg4[%c288, %c0_42] : memref<416x64xf32, #tpu.memory_space<vmem>>, vector<64x64xf32>
    %cst_43 = arith.constant dense<0.000000e+00> : vector<16x64xf32>
    %89 = tpu.matmul %87, %88, %cst_43 {dimension_numbers = #tpu.dot_dimension_numbers<[1], [0], [0], [1], [0, 0, 1, 1], [], []>} : vector<16x64xf32>, vector<64x64xf32>, vector<16x64xf32> -> vector<16x64xf32>
    %c96_44 = arith.constant 96 : index
    %c0_45 = arith.constant 0 : index
    %90 = vector.load %arg5[%c96_44, %c0_45] : memref<192x64xf32, #tpu.memory_space<vmem>>, vector<16x64xf32>
    %91 = arith.addf %89, %90 : vector<16x64xf32>
    %92 = arith.negf %91 : vector<16x64xf32>
    %93 = math.exp %92 : vector<16x64xf32>
    %cst_46 = arith.constant 1.000000e+00 : f32
    %94 = vector.broadcast %cst_46 : f32 to vector<16x64xf32>
    %95 = arith.addf %94, %93 : vector<16x64xf32>
    %96 = arith.divf %94, %95 : vector<16x64xf32>
    %97 = arith.mulf %91, %96 : vector<16x64xf32>
    %c352 = arith.constant 352 : index
    %c0_47 = arith.constant 0 : index
    %98 = vector.load %arg4[%c352, %c0_47] : memref<416x64xf32, #tpu.memory_space<vmem>>, vector<64x64xf32>
    %cst_48 = arith.constant dense<0.000000e+00> : vector<16x64xf32>
    %99 = tpu.matmul %97, %98, %cst_48 {dimension_numbers = #tpu.dot_dimension_numbers<[1], [0], [0], [1], [0, 0, 1, 1], [], []>} : vector<16x64xf32>, vector<64x64xf32>, vector<16x64xf32> -> vector<16x64xf32>
    %c112 = arith.constant 112 : index
    %c0_49 = arith.constant 0 : index
    %100 = vector.load %arg5[%c112, %c0_49] : memref<192x64xf32, #tpu.memory_space<vmem>>, vector<16x64xf32>
    %101 = arith.addf %99, %100 : vector<16x64xf32>
    %102 = arith.negf %101 : vector<16x64xf32>
    %103 = math.exp %102 : vector<16x64xf32>
    %cst_50 = arith.constant 1.000000e+00 : f32
    %104 = vector.broadcast %cst_50 : f32 to vector<16x64xf32>
    %105 = arith.addf %104, %103 : vector<16x64xf32>
    %106 = arith.divf %104, %105 : vector<16x64xf32>
    %107 = arith.mulf %101, %106 : vector<16x64xf32>
    %c128 = arith.constant 128 : index
    %c0_51 = arith.constant 0 : index
    %108 = vector.load %arg5[%c128, %c0_51] : memref<192x64xf32, #tpu.memory_space<vmem>>, vector<16x64xf32>
    %109 = arith.mulf %107, %108 : vector<16x64xf32>
    %c144 = arith.constant 144 : index
    %c0_52 = arith.constant 0 : index
    %110 = vector.load %arg5[%c144, %c0_52] : memref<192x64xf32, #tpu.memory_space<vmem>>, vector<16x64xf32>
    %111 = arith.addf %109, %110 : vector<16x64xf32>
    %cst_53 = arith.constant dense<0.000000e+00> : vector<16xf32>
    %112 = vector.multi_reduction <add>, %111, %cst_53 [1] : vector<16x64xf32> to vector<16xf32>
    %113 = vector.shape_cast %112 : vector<16xf32> to vector<16x1xf32>
    %cst_54 = arith.constant -2.712400e+00 : f32
    %114 = vector.broadcast %cst_54 : f32 to vector<16x1xf32>
    %115 = arith.mulf %114, %3 : vector<16x1xf32>
    %116 = math.exp %115 : vector<16x1xf32>
    %cst_55 = arith.constant 7.596450e+01 : f32
    %117 = vector.broadcast %cst_55 : f32 to vector<16x1xf32>
    %118 = arith.mulf %117, %116 : vector<16x1xf32>
    %cst_56 = arith.constant 1.700000e+00 : f32
    %119 = vector.broadcast %cst_56 : f32 to vector<16x1xf32>
    %120 = arith.cmpf ogt, %3, %119 : vector<16x1xf32>
    %121 = arith.extui %120 : vector<16x1xi1> to vector<16x1xi32>
    %122 = arith.sitofp %121 : vector<16x1xi32> to vector<16x1xf32>
    %123 = arith.mulf %118, %122 : vector<16x1xf32>
    %124 = arith.addf %113, %123 : vector<16x1xf32>
    %c0_57 = arith.constant 0 : index
    %c8 = arith.constant 8 : index
    %c0_58 = arith.constant 0 : index
    %125 = vector.load %arg6[%c0_57, %c8, %c0_58] : memref<1x24x1xf32, #tpu.memory_space<vmem>>, vector<1x16x1xf32>
    %126 = vector.shape_cast %125 : vector<1x16x1xf32> to vector<16x1xf32>
    %127 = vector.shape_cast %124 : vector<16x1xf32> to vector<1x16x1xf32>
    tpu.vector_store %arg6[%c0_57, %c8, %c0_58], %127 {strides = array<i32>} : memref<1x24x1xf32, #tpu.memory_space<vmem>>, vector<1x16x1xf32>,
    return
  }
  func.func @transform_0(%arg0: i32) -> (i32, i32, i32) {
    %c0_i32 = arith.constant 0 : i32
    %c0_i32_0 = arith.constant 0 : i32
    %c0_i32_1 = arith.constant 0 : i32
    return %arg0, %c0_i32, %c0_i32_0 : i32, i32, i32
  }
  func.func @transform_1(%arg0: i32) -> (i32, i32, i32) {
    %c0_i32 = arith.constant 0 : i32
    %c0_i32_0 = arith.constant 0 : i32
    %c0_i32_1 = arith.constant 0 : i32
    return %arg0, %c0_i32, %c0_i32_0 : i32, i32, i32
  }
  func.func @transform_2(%arg0: i32) -> (i32, i32, i32) {
    %c0_i32 = arith.constant 0 : i32
    %c0_i32_0 = arith.constant 0 : i32
    %c0_i32_1 = arith.constant 0 : i32
    return %arg0, %c0_i32, %c0_i32_0 : i32, i32, i32
  }
  func.func @transform_3(%arg0: i32) -> (i32, i32) {
    %c0_i32 = arith.constant 0 : i32
    %c0_i32_0 = arith.constant 0 : i32
    %c0_i32_1 = arith.constant 0 : i32
    return %c0_i32, %c0_i32_0 : i32, i32
  }
  func.func @transform_4(%arg0: i32) -> (i32, i32) {
    %c0_i32 = arith.constant 0 : i32
    %c0_i32_0 = arith.constant 0 : i32
    %c0_i32_1 = arith.constant 0 : i32
    return %c0_i32, %c0_i32_0 : i32, i32
  }
  func.func @transform_5(%arg0: i32) -> (i32, i32, i32) {
    %c0_i32 = arith.constant 0 : i32
    %c0_i32_0 = arith.constant 0 : i32
    %c0_i32_1 = arith.constant 0 : i32
    return %arg0, %c0_i32, %c0_i32_0 : i32, i32, i32
  }
}

</mosaic_0001>

<llo_original>
// kernel: phys_interaction_net_forward.1
$region0: #{phys_interaction_net_forward.1}
  #allocation0 [shape = 'u32[]', space=smem, size = 0x4, offset = 0x4, fixed_abs, tag = 'smem constant byte address 0x4 - core index']
  #allocation1 [shape = 'u32[144,128]{1,0:T(1,128)}', space=vmem, size = 0x12000, scoped, tag = 'internal scratch']
  %s0 = inlined_call_operand.vmem [shape: f32[4,8,32], index: 0, kind: input, shape index: {}]
  %s1 = inlined_call_operand.vmem [shape: s32[4,16,2], index: 1, kind: input, shape index: {}]
  %s2 = inlined_call_operand.vmem [shape: f32[4,16,1], index: 2, kind: input, shape index: {}]
  %s3 = inlined_call_operand.vmem [shape: f32[416,64], index: 3, kind: input, shape index: {}]
  %s4 = inlined_call_operand.vmem [shape: f32[192,64], index: 4, kind: input, shape index: {}]
  %s5 = inlined_call_operand.vmem [shape: f32[4,24,1], index: 5, kind: output, shape index: {}]
  %s6 = sld [smem:[#allocation0]]
  $region53: #{phys_interaction_net_forward.1} parent=0
    _
  %s8 = ssub.s32 1, %s6
  %s9 = scalar_select 0, %s8, %s6
  loop: start=0, step=1, limit=6
  $region2: #{phys_interaction_net_forward.1} parent=0 // loop_pre_header
    _
  $region3: #{phys_interaction_net_forward.1} parent=0 // loop_header
    %s11 = sphi 0, %s15
    %p12 = scmp.ge.s32.totalorder %s11, 6
    %s21 = sphi 0, %s23
    %s24 = sphi 0, %s21
    %s25 = sphi 0, %s24
    %s41 = sphi 0, %s25
    %s47 = sphi 0, %s49
    %s50 = sphi 0, %s47
    %s51 = sphi 0, %s50
    %s67 = sphi 0, %s51
    %s73 = sphi 0, %s75
    %s76 = sphi 0, %s73
    %s77 = sphi 0, %s76
    %s93 = sphi 0, %s77
    %s97 = sphi 0, %s97
    %s99 = sphi 0, %s97
    %s100 = sphi 0, %s99
    %s114 = sphi 0, %s100
    %s118 = sphi 0, %s118
    %s120 = sphi 0, %s118
    %s121 = sphi 0, %s120
    %s135 = sphi 0, %s121
    %s141 = sphi 0, %s143
    %s144 = sphi 0, %s141
    %s145 = sphi 0, %s144
    %s161 = sphi 0, %s145
  $region4: #{phys_interaction_net_forward.1} parent=0 // loop_header_branch
    %14 = sbr.rel (%p12) target = $region8
  $region5: #{phys_interaction_net_forward.1} parent=0 // loop_body
    %s16 = ssub.s32 %s11, 1
    %s17 = ssub.s32 %s11, 2
    %s18 = sadd.s32 %s11, 1
    %s19 = ssub.s32 %s11, %s18
    %p20 = scmp.eq.s32.totalorder %s19, 0
    %s22 = sadd.s32 %s21, 1
    %s23 = scalar_select %p20, %s21, %s22
    %p26 = pneg %p20
    %p27 = scmp.eq.s32.totalorder %s11, 3
    %p28 = por %p26, %p27
    %p29 = scmp.ne.s32.totalorder %s21, %s24
    %p30 = scmp.eq.s32.totalorder %s11, 0
    %p31 = por %p29, %p30
    %p32 = scmp.ne.s32.totalorder %s21, %s24
    %p33 = scmp.eq.s32.totalorder %s16, 3
    %p34 = por %p32, %p33
    %p35 = scmp.ne.s32.totalorder %s24, %s25
    %p36 = scmp.eq.s32.totalorder %s16, 0
    %p37 = por %p35, %p36
    %p38 = scmp.ne.s32.totalorder %s24, %s25
    %p39 = scmp.eq.s32.totalorder %s17, 3
    %p40 = por %p38, %p39
    %p42 = scmp.ne.s32.totalorder %s25, %s41
    %p43 = scmp.eq.s32.totalorder %s17, 0
    %p44 = por %p42, %p43
    %s45 = ssub.s32 %s11, %s18
    %p46 = scmp.eq.s32.totalorder %s45, 0
    %s48 = sadd.s32 %s47, 1
    %s49 = scalar_select %p46, %s47, %s48
    %p52 = pneg %p46
    %p53 = scmp.eq.s32.totalorder %s11, 3
    %p54 = por %p52, %p53
    %p55 = scmp.ne.s32.totalorder %s47, %s50
    %p56 = scmp.eq.s32.totalorder %s11, 0
    %p57 = por %p55, %p56
    %p58 = scmp.ne.s32.totalorder %s47, %s50
    %p59 = scmp.eq.s32.totalorder %s16, 3
    %p60 = por %p58, %p59
    %p61 = scmp.ne.s32.totalorder %s50, %s51
    %p62 = scmp.eq.s32.totalorder %s16, 0
    %p63 = por %p61, %p62
    %p64 = scmp.ne.s32.totalorder %s50, %s51
    %p65 = scmp.eq.s32.totalorder %s17, 3
    %p66 = por %p64, %p65
    %p68 = scmp.ne.s32.totalorder %s51, %s67
    %p69 = scmp.eq.s32.totalorder %s17, 0
    %p70 = por %p68, %p69
    %s71 = ssub.s32 %s11, %s18
    %p72 = scmp.eq.s32.totalorder %s71, 0
    %s74 = sadd.s32 %s73, 1
    %s75 = scalar_select %p72, %s73, %s74
    %p78 = pneg %p72
    %p79 = scmp.eq.s32.totalorder %s11, 3
    %p80 = por %p78, %p79
    %p81 = scmp.ne.s32.totalorder %s73, %s76
    %p82 = scmp.eq.s32.totalorder %s11, 0
    %p83 = por %p81, %p82
    %p84 = scmp.ne.s32.totalorder %s73, %s76
    %p85 = scmp.eq.s32.totalorder %s16, 3
    %p86 = por %p84, %p85
    %p87 = scmp.ne.s32.totalorder %s76, %s77
    %p88 = scmp.eq.s32.totalorder %s16, 0
    %p89 = por %p87, %p88
    %p90 = scmp.ne.s32.totalorder %s76, %s77
    %p91 = scmp.eq.s32.totalorder %s17, 3
    %p92 = por %p90, %p91
    %p94 = scmp.ne.s32.totalorder %s77, %s93
    %p95 = scmp.eq.s32.totalorder %s17, 0
    %p96 = por %p94, %p95
    %s98 = sadd.s32 %s97, 1
    %p101 = scmp.eq.s32.totalorder %s11, 3
    %p102 = scmp.ne.s32.totalorder %s97, %s99
    %p103 = scmp.eq.s32.totalorder %s11, 0
    %p104 = por %p102, %p103
    %p105 = scmp.ne.s32.totalorder %s97, %s99
    %p106 = scmp.eq.s32.totalorder %s16, 3
    %p107 = por %p105, %p106
    %p108 = scmp.ne.s32.totalorder %s99, %s100
    %p109 = scmp.eq.s32.totalorder %s16, 0
    %p110 = por %p108, %p109
    %p111 = scmp.ne.s32.totalorder %s99, %s100
    %p112 = scmp.eq.s32.totalorder %s17, 3
    %p113 = por %p111, %p112
    %p115 = scmp.ne.s32.totalorder %s100, %s114
    %p116 = scmp.eq.s32.totalorder %s17, 0
    %p117 = por %p115, %p116
    %s119 = sadd.s32 %s118, 1
    %p122 = scmp.eq.s32.totalorder %s11, 3
    %p123 = scmp.ne.s32.totalorder %s118, %s120
    %p124 = scmp.eq.s32.totalorder %s11, 0
    %p125 = por %p123, %p124
    %p126 = scmp.ne.s32.totalorder %s118, %s120
    %p127 = scmp.eq.s32.totalorder %s16, 3
    %p128 = por %p126, %p127
    %p129 = scmp.ne.s32.totalorder %s120, %s121
    %p130 = scmp.eq.s32.totalorder %s16, 0
    %p131 = por %p129, %p130
    %p132 = scmp.ne.s32.totalorder %s120, %s121
    %p133 = scmp.eq.s32.totalorder %s17, 3
    %p134 = por %p132, %p133
    %p136 = scmp.ne.s32.totalorder %s121, %s135
    %p137 = scmp.eq.s32.totalorder %s17, 0
    %p138 = por %p136, %p137
    %s139 = ssub.s32 %s11, %s18
    %p140 = scmp.eq.s32.totalorder %s139, 0
    %s142 = sadd.s32 %s141, 1
    %s143 = scalar_select %p140, %s141, %s142
    %p146 = pneg %p140
    %p147 = scmp.eq.s32.totalorder %s11, 3
    %p148 = por %p146, %p147
    %p149 = scmp.ne.s32.totalorder %s141, %s144
    %p150 = scmp.eq.s32.totalorder %s11, 0
    %p151 = por %p149, %p150
    %p152 = scmp.ne.s32.totalorder %s141, %s144
    %p153 = scmp.eq.s32.totalorder %s16, 3
    %p154 = por %p152, %p153
    %p155 = scmp.ne.s32.totalorder %s144, %s145
    %p156 = scmp.eq.s32.totalorder %s16, 0
    %p157 = por %p155, %p156
    %p158 = scmp.ne.s32.totalorder %s144, %s145
    %p159 = scmp.eq.s32.totalorder %s17, 3
    %p160 = por %p158, %p159
    %p162 = scmp.ne.s32.totalorder %s145, %s161
    %p163 = scmp.eq.s32.totalorder %s17, 0
    %p164 = por %p162, %p163
    %p165 = scmp.le.s32.totalorder 1, %s11
    %p166 = scmp.lt.s32.totalorder %s11, 5
    %p167 = pnand %p165, %p166
    %p168 = pneg %p167
    // Predicated region
    $region9: #{phys_interaction_net_forward.1} parent=5 // pred_check
      _
    $region10: #{phys_interaction_net_forward.1} parent=5 // pred_check_branch
      %170 = sbr.rel (%p167) target = $region12
    $region11: #{phys_interaction_net_forward.1} parent=5 // pred_region
      %s171 = ssub.s32 %s11, 1
      // Predicated region
      $region13: #{phys_interaction_net_forward.1} parent=11 // pred_check
        %p172 = pneg %p110
      $region14: #{phys_interaction_net_forward.1} parent=11 // pred_check_branch
        %174 = sbr.rel (%p172) target = $region16
      $region15: #{phys_interaction_net_forward.1} parent=11 // pred_region
        _
      $region16: #{phys_interaction_net_forward.1} parent=11 // pred_fallthru
        _
      // Predicated region
      $region17: #{phys_interaction_net_forward.1} parent=11 // pred_check
        %p175 = pneg %p131
      $region18: #{phys_interaction_net_forward.1} parent=11 // pred_check_branch
        %177 = sbr.rel (%p175) target = $region20
      $region19: #{phys_interaction_net_forward.1} parent=11 // pred_region
        _
      $region20: #{phys_interaction_net_forward.1} parent=11 // pred_fallthru
        _
    $region12: #{phys_interaction_net_forward.1} parent=5 // pred_fallthru
      _
    %p178 = scmp.lt.s32.totalorder %s11, 4
    // Predicated region
    $region21: #{phys_interaction_net_forward.1} parent=5 // pred_check
      %p179 = pneg %p178
    $region22: #{phys_interaction_net_forward.1} parent=5 // pred_check_branch
      %181 = sbr.rel (%p179) target = $region24
    $region23: #{phys_interaction_net_forward.1} parent=5 // pred_region
      // Predicated region
      $region25: #{phys_interaction_net_forward.1} parent=23 // pred_check
        %p182 = pneg %p31
      $region26: #{phys_interaction_net_forward.1} parent=23 // pred_check_branch
        %184 = sbr.rel (%p182) target = $region28
      $region27: #{phys_interaction_net_forward.1} parent=23 // pred_region
        %p185 = scmp.lt.s32.totalorder %s11, 3
        %s186 = scalar_select %p185, %s11, 3
        %s187 = smul.addr %s186, 8
        %s188 = scalar_lea.vmem %s0, %s187
      $region28: #{phys_interaction_net_forward.1} parent=23 // pred_fallthru
        _
      // Predicated region
      $region29: #{phys_interaction_net_forward.1} parent=23 // pred_check
        %p189 = pneg %p57
      $region30: #{phys_interaction_net_forward.1} parent=23 // pred_check_branch
        %191 = sbr.rel (%p189) target = $region32
      $region31: #{phys_interaction_net_forward.1} parent=23 // pred_region
        %p192 = scmp.lt.s32.totalorder %s11, 3
        %s193 = scalar_select %p192, %s11, 3
        %s194 = smul.addr %s193, 2
        %s195 = smul.addr %s194, 8
        %s196 = scalar_lea.vmem %s1, %s195
      $region32: #{phys_interaction_net_forward.1} parent=23 // pred_fallthru
        _
      // Predicated region
      $region33: #{phys_interaction_net_forward.1} parent=23 // pred_check
        %p197 = pneg %p83
      $region34: #{phys_interaction_net_forward.1} parent=23 // pred_check_branch
        %199 = sbr.rel (%p197) target = $region36
      $region35: #{phys_interaction_net_forward.1} parent=23 // pred_region
        %p200 = scmp.lt.s32.totalorder %s11, 3
        %s201 = scalar_select %p200, %s11, 3
        %s202 = smul.addr %s201, 2
        %s203 = smul.addr %s202, 8
        %s204 = scalar_lea.vmem %s2, %s203
      $region36: #{phys_interaction_net_forward.1} parent=23 // pred_fallthru
        _
    $region24: #{phys_interaction_net_forward.1} parent=5 // pred_fallthru
      _
    %p205 = scmp.le.s32.totalorder 1, %s11
    %p206 = scmp.lt.s32.totalorder %s11, 5
    %p207 = pnand %p205, %p206
    %p208 = pneg %p207
    // Predicated region
    $region37: #{phys_interaction_net_forward.1} parent=5 // pred_check
      _
    $region38: #{phys_interaction_net_forward.1} parent=5 // pred_check_branch
      %210 = sbr.rel (%p207) target = $region40
    $region39: #{phys_interaction_net_forward.1} parent=5 // pred_region
      %s211 = ssub.s32 %s11, 1
      %p212 = scmp.lt.s32.totalorder %s16, 3
      %s213 = scalar_select %p212, %s16, 3
      %s214 = smul.addr %s213, 8
      %s215 = scalar_lea.vmem %s0, %s214
      %p216 = pneg %p37
      %p217 = pneg %p34
      %p218 = scmp.lt.s32.totalorder %s16, 3
      %s219 = scalar_select %p218, %s16, 3
      %s220 = smul.addr %s219, 2
      %s221 = smul.addr %s220, 8
      %s222 = scalar_lea.vmem %s1, %s221
      %p223 = pneg %p63
      %p224 = pneg %p60
      %p225 = scmp.lt.s32.totalorder %s16, 3
      %s226 = scalar_select %p225, %s16, 3
      %s227 = smul.addr %s226, 2
      %s228 = smul.addr %s227, 8
      %s229 = scalar_lea.vmem %s2, %s228
      %p230 = pneg %p89
      %p231 = pneg %p86
      %p232 = pneg %p110
      %p233 = pneg %p107
      %p234 = pneg %p131
      %p235 = pneg %p128
      %p236 = pneg %p157
      %p237 = pneg %p154
      %p238 = scmp.lt.s32.totalorder %s16, 3
      %s239 = scalar_select %p238, %s16, 3
      %s240 = smul.addr %s239, 3
      %s241 = smul.addr %s240, 8
      %s242 = scalar_lea.vmem %s5, %s241
      %p243 = scmp.lt.s32.totalorder %s16, 3
      %s244 = scalar_select %p243, %s16, 3
      %s245 = smul.addr %s244, 8
      %s246 = scalar_lea.vmem %s0, %s245
      %p247 = scmp.lt.s32.totalorder %s16, 3
      %s248 = scalar_select %p247, %s16, 3
      %s249 = smul.addr %s248, 2
      %s250 = smul.addr %s249, 8
      %s251 = scalar_lea.vmem %s1, %s250
      %p252 = scmp.lt.s32.totalorder %s16, 3
      %s253 = scalar_select %p252, %s16, 3
      %s254 = smul.addr %s253, 2
      %s255 = smul.addr %s254, 8
      %s256 = scalar_lea.vmem %s2, %s255
      %p257 = scmp.lt.s32.totalorder %s16, 3
      %s258 = scalar_select %p257, %s16, 3
      %s259 = smul.addr %s258, 3
      %s260 = smul.addr %s259, 8
      %s261 = scalar_lea.vmem %s5, %s260
      %v262 = vld [vmem:[%s246] sm:$0xff]
      %v263 = vld [vmem:[%s256] sm:$0xff]
      %v264 = vld [vmem:[%s256 + $0x8] sm:$0xff]
      %v265 = vld [vmem:[%s251] sm:$0xff]
      %v266 = vld [vmem:[%s251 + $0x8] sm:$0xff]
      %v267 = vld [vmem:[%s3] sm:$0xff]
      %v268 = vld [vmem:[%s3 + $0x8] sm:$0xff]
      %v269 = vld [vmem:[%s3 + $0x10] sm:$0xff]
      %v270 = vld [vmem:[%s3 + $0x18] sm:$0xff]
      %v271 = vld [vmem:[%s4] sm:$0xff]
      %vm272 = vcmask 261120
      %v274 = vsel %vm272, %v262, 0
      %276 = vmatprep.subr.mxu0 0.0
      %277 = vmatpush1.msra.mxu0 0.0
      %278 = vmatprep.subr.mxu0 0.0
      %279 = vmatpush1.msra.mxu0 0.0
      %280 = vmatprep.subr.mxu0 0.0
      %281 = vmatpush1.msra.mxu0 0.0
      %282 = vmatprep.subr.mxu0 0.0
      %283 = vmatpush1.msra.mxu0 0.0
      %284 = vmatprep.subr.mxu0 0.0
      %285 = vmatpush1.msra.mxu0 0.0
      %286 = vmatprep.subr.mxu0 0.0
      %287 = vmatpush1.msra.mxu0 0.0
      %288 = vmatprep.subr.mxu0 0.0
      %289 = vmatpush1.msra.mxu0 0.0
      %290 = vmatprep.subr.mxu0 0.0
      %291 = vmatpush1.msra.mxu0 0.0
      %292 = vmatprep.subr.mxu0 0.0
      %293 = vmatpush1.msra.mxu0 0.0
      %294 = vmatprep.subr.mxu0 0.0
      %295 = vmatpush1.msra.mxu0 0.0
      %296 = vmatprep.subr.mxu0 0.0
      %297 = vmatpush1.msra.mxu0 0.0
      %298 = vmatprep.subr.mxu0 0.0
      %299 = vmatpush1.msra.mxu0 0.0
      %300 = vmatprep.subr.mxu0 0.0
      %301 = vmatpush1.msra.mxu0 %v270
      %302 = vmatprep.subr.mxu0 0.0
      %303 = vmatpush1.msra.mxu0 %v269
      %304 = vmatprep.subr.mxu0 0.0
      %305 = vmatpush1.msra.mxu0 %v268
      %306 = vmatprep.subr.mxu0 0.0
      %307 = vmatpush1.msra.mxu0 %v267
      %308 = vmatprep.subr.mxu0 0.0
      %309 = vmatpush2.msra.mxu0 0.0
      %310 = vmatprep.subr.mxu0 0.0
      %311 = vmatpush2.msra.mxu0 0.0
      %312 = vmatprep.subr.mxu0 0.0
      %313 = vmatpush2.msra.mxu0 0.0
      %314 = vmatprep.subr.mxu0 0.0
      %315 = vmatpush2.msra.mxu0 0.0
      %316 = vmatprep.subr.mxu0 0.0
      %317 = vmatpush2.msra.mxu0 0.0
      %318 = vmatprep.subr.mxu0 0.0
      %319 = vmatpush2.msra.mxu0 0.0
      %320 = vmatprep.subr.mxu0 0.0
      %321 = vmatpush2.msra.mxu0 0.0
      %322 = vmatprep.subr.mxu0 0.0
      %323 = vmatpush2.msra.mxu0 0.0
      %324 = vmatprep.subr.mxu0 0.0
      %325 = vmatpush2.msra.mxu0 0.0
      %326 = vmatprep.subr.mxu0 0.0
      %327 = vmatpush2.msra.mxu0 0.0
      %328 = vmatprep.subr.mxu0 0.0
      %329 = vmatpush2.msra.mxu0 0.0
      %330 = vmatprep.subr.mxu0 0.0
      %331 = vmatpush2.msra.mxu0 0.0
      %332 = vmatprep.subr.mxu0 0.0
      %333 = vmatpush2.msra.mxu0 0.0
      %334 = vmatprep.subr.mxu0 0.0
      %335 = vmatpush2.msra.mxu0 0.0
      %336 = vmatprep.subr.mxu0 0.0
      %337 = vmatpush2.msra.mxu0 0.0
      %338 = vmatprep.subr.mxu0 0.0
      %339 = vmatpush2.msra.mxu0 0.0
      %340 = vmatprep.mubr.f32.mxu0 0.0
      %341 = vmatmul.mubr.f32.gmra.mxu0 %v274
      %v342 = vpop.f32.mrf.mxu0
      %v343 = vadd.f32 %v271, %v342
      %v344 = vpop.f32.mrf.mxu0
      %345 = vdwg.mxu0
      %v346 = vxor.u32 %v343, 2147483648
      %v347 = vmul.f32 %v346, 1.442695
      %v348 = vpow.pop %v347
      %v349 = vadd.f32 %v348, 1.0
      %v350 = vrcp.pop %v349
      %v351 = vmul.f32 1.0, %v350
      %v352 = vmul.f32 %v343, %v351
      %v353 = vld [vmem:[%s3 + $0x20] sm:$0xff]
      %v354 = vld [vmem:[%s3 + $0x28] sm:$0xff]
      %v355 = vld [vmem:[%s3 + $0x30] sm:$0xff]
      %v356 = vld [vmem:[%s3 + $0x38] sm:$0xff]
      %v357 = vld [vmem:[%s3 + $0x40] sm:$0xff]
      %v358 = vld [vmem:[%s3 + $0x48] sm:$0xff]
      %v359 = vld [vmem:[%s3 + $0x50] sm:$0xff]
      %v360 = vld [vmem:[%s3 + $0x58] sm:$0xff]
      %v361 = vld [vmem:[%s4 + $0x10] sm:$0xff]
      %vm362 = vcmask 523264
      %v364 = vsel %vm362, %v352, 0
      %366 = vmatprep.subr.mxu0 0.0
      %367 = vmatpush1.msra.mxu0 0.0
      %368 = vmatprep.subr.mxu0 0.0
      %369 = vmatpush1.msra.mxu0 0.0
      %370 = vmatprep.subr.mxu0 0.0
      %371 = vmatpush1.msra.mxu0 0.0
      %372 = vmatprep.subr.mxu0 0.0
      %373 = vmatpush1.msra.mxu0 0.0
      %374 = vmatprep.subr.mxu0 0.0
      %375 = vmatpush1.msra.mxu0 0.0
      %376 = vmatprep.subr.mxu0 0.0
      %377 = vmatpush1.msra.mxu0 0.0
      %378 = vmatprep.subr.mxu0 0.0
      %379 = vmatpush1.msra.mxu0 0.0
      %380 = vmatprep.subr.mxu0 0.0
      %381 = vmatpush1.msra.mxu0 0.0
      %382 = vmatprep.subr.mxu0 0.0
      %383 = vmatpush1.msra.mxu0 %v360
      %384 = vmatprep.subr.mxu0 0.0
      %385 = vmatpush1.msra.mxu0 %v359
      %386 = vmatprep.subr.mxu0 0.0
      %387 = vmatpush1.msra.mxu0 %v358
      %388 = vmatprep.subr.mxu0 0.0
      %389 = vmatpush1.msra.mxu0 %v357
      %390 = vmatprep.subr.mxu0 0.0
      %391 = vmatpush1.msra.mxu0 %v356
      %392 = vmatprep.subr.mxu0 0.0
      %393 = vmatpush1.msra.mxu0 %v355
      %394 = vmatprep.subr.mxu0 0.0
      %395 = vmatpush1.msra.mxu0 %v354
      %396 = vmatprep.subr.mxu0 0.0
      %397 = vmatpush1.msra.mxu0 %v353
      %398 = vmatprep.subr.mxu0 0.0
      %399 = vmatpush2.msra.mxu0 0.0
      %400 = vmatprep.subr.mxu0 0.0
      %401 = vmatpush2.msra.mxu0 0.0
      %402 = vmatprep.subr.mxu0 0.0
      %403 = vmatpush2.msra.mxu0 0.0
      %404 = vmatprep.subr.mxu0 0.0
      %405 = vmatpush2.msra.mxu0 0.0
      %406 = vmatprep.subr.mxu0 0.0
      %407 = vmatpush2.msra.mxu0 0.0
      %408 = vmatprep.subr.mxu0 0.0
      %409 = vmatpush2.msra.mxu0 0.0
      %410 = vmatprep.subr.mxu0 0.0
      %411 = vmatpush2.msra.mxu0 0.0
      %412 = vmatprep.subr.mxu0 0.0
      %413 = vmatpush2.msra.mxu0 0.0
      %414 = vmatprep.subr.mxu0 0.0
      %415 = vmatpush2.msra.mxu0 0.0
      %416 = vmatprep.subr.mxu0 0.0
      %417 = vmatpush2.msra.mxu0 0.0
      %418 = vmatprep.subr.mxu0 0.0
      %419 = vmatpush2.msra.mxu0 0.0
      %420 = vmatprep.subr.mxu0 0.0
      %421 = vmatpush2.msra.mxu0 0.0
      %422 = vmatprep.subr.mxu0 0.0
      %423 = vmatpush2.msra.mxu0 0.0
      %424 = vmatprep.subr.mxu0 0.0
      %425 = vmatpush2.msra.mxu0 0.0
      %426 = vmatprep.subr.mxu0 0.0
      %427 = vmatpush2.msra.mxu0 0.0
      %428 = vmatprep.subr.mxu0 0.0
      %429 = vmatpush2.msra.mxu0 0.0
      %430 = vmatprep.mubr.f32.mxu0 0.0
      %431 = vmatmul.mubr.f32.gmra.mxu0 %v364
      %v432 = vpop.f32.mrf.mxu0
      %v433 = vadd.f32 %v361, %v432
      %v434 = vpop.f32.mrf.mxu0
      %435 = vdwg.mxu0
      %v436 = vxor.u32 %v433, 2147483648
      %v437 = vmul.f32 %v436, 1.442695
      %v438 = vpow.pop %v437
      %v439 = vadd.f32 %v438, 1.0
      %v440 = vrcp.pop %v439
      %v441 = vmul.f32 1.0, %v440
      %v442 = vmul.f32 %v433, %v441
      %v443 = vld [vmem:[%s3 + $0x60] sm:$0xff]
      %v444 = vld [vmem:[%s3 + $0x68] sm:$0xff]
      %v445 = vld [vmem:[%s3 + $0x70] sm:$0xff]
      %v446 = vld [vmem:[%s3 + $0x78] sm:$0xff]
      %v447 = vld [vmem:[%s3 + $0x80] sm:$0xff]
      %v448 = vld [vmem:[%s3 + $0x88] sm:$0xff]
      %v449 = vld [vmem:[%s3 + $0x90] sm:$0xff]
      %v450 = vld [vmem:[%s3 + $0x98] sm:$0xff]
      %v451 = vld [vmem:[%s4 + $0x20] sm:$0xff]
      %v453 = vsel %vm362, %v442, 0
      %455 = vmatprep.subr.mxu0 0.0
      %456 = vmatpush1.msra.mxu0 0.0
      %457 = vmatprep.subr.mxu0 0.0
      %458 = vmatpush1.msra.mxu0 0.0
      %459 = vmatprep.subr.mxu0 0.0
      %460 = vmatpush1.msra.mxu0 0.0
      %461 = vmatprep.subr.mxu0 0.0
      %462 = vmatpush1.msra.mxu0 0.0
      %463 = vmatprep.subr.mxu0 0.0
      %464 = vmatpush1.msra.mxu0 0.0
      %465 = vmatprep.subr.mxu0 0.0
      %466 = vmatpush1.msra.mxu0 0.0
      %467 = vmatprep.subr.mxu0 0.0
      %468 = vmatpush1.msra.mxu0 0.0
      %469 = vmatprep.subr.mxu0 0.0
      %470 = vmatpush1.msra.mxu0 0.0
      %471 = vmatprep.subr.mxu0 0.0
      %472 = vmatpush1.msra.mxu0 %v450
      %473 = vmatprep.subr.mxu0 0.0
      %474 = vmatpush1.msra.mxu0 %v449
      %475 = vmatprep.subr.mxu0 0.0
      %476 = vmatpush1.msra.mxu0 %v448
      %477 = vmatprep.subr.mxu0 0.0
      %478 = vmatpush1.msra.mxu0 %v447
      %479 = vmatprep.subr.mxu0 0.0
      %480 = vmatpush1.msra.mxu0 %v446
      %481 = vmatprep.subr.mxu0 0.0
      %482 = vmatpush1.msra.mxu0 %v445
      %483 = vmatprep.subr.mxu0 0.0
      %484 = vmatpush1.msra.mxu0 %v444
      %485 = vmatprep.subr.mxu0 0.0
      %486 = vmatpush1.msra.mxu0 %v443
      %487 = vmatprep.subr.mxu0 0.0
      %488 = vmatpush2.msra.mxu0 0.0
      %489 = vmatprep.subr.mxu0 0.0
      %490 = vmatpush2.msra.mxu0 0.0
      %491 = vmatprep.subr.mxu0 0.0
      %492 = vmatpush2.msra.mxu0 0.0
      %493 = vmatprep.subr.mxu0 0.0
      %494 = vmatpush2.msra.mxu0 0.0
      %495 = vmatprep.subr.mxu0 0.0
      %496 = vmatpush2.msra.mxu0 0.0
      %497 = vmatprep.subr.mxu0 0.0
      %498 = vmatpush2.msra.mxu0 0.0
      %499 = vmatprep.subr.mxu0 0.0
      %500 = vmatpush2.msra.mxu0 0.0
      %501 = vmatprep.subr.mxu0 0.0
      %502 = vmatpush2.msra.mxu0 0.0
      %503 = vmatprep.subr.mxu0 0.0
      %504 = vmatpush2.msra.mxu0 0.0
      %505 = vmatprep.subr.mxu0 0.0
      %506 = vmatpush2.msra.mxu0 0.0
      %507 = vmatprep.subr.mxu0 0.0
      %508 = vmatpush2.msra.mxu0 0.0
      %509 = vmatprep.subr.mxu0 0.0
      %510 = vmatpush2.msra.mxu0 0.0
      %511 = vmatprep.subr.mxu0 0.0
      %512 = vmatpush2.msra.mxu0 0.0
      %513 = vmatprep.subr.mxu0 0.0
      %514 = vmatpush2.msra.mxu0 0.0
      %515 = vmatprep.subr.mxu0 0.0
      %516 = vmatpush2.msra.mxu0 0.0
      %517 = vmatprep.subr.mxu0 0.0
      %518 = vmatpush2.msra.mxu0 0.0
      %519 = vmatprep.mubr.f32.mxu0 0.0
      %520 = vmatmul.mubr.f32.gmra.mxu0 %v453
      %v521 = vpop.f32.mrf.mxu0
      %v522 = vadd.f32 %v451, %v521
      %v523 = vpop.f32.mrf.mxu0
      %524 = vdwg.mxu0
      %v525 = vxor.u32 %v522, 2147483648
      %v526 = vmul.f32 %v525, 1.442695
      %v527 = vpow.pop %v526
      %v528 = vadd.f32 %v527, 1.0
      %v529 = vrcp.pop %v528
      %v530 = vmul.f32 1.0, %v529
      %v531 = vmul.f32 %v522, %v530
      %v532 = vld [vmem:[%s4 + $0x30] sm:$0xff]
      %v533 = vmul.f32 %v531, %v532
      %v534 = vld [vmem:[%s4 + $0x40] sm:$0xff]
      %v535 = vadd.f32 %v533, %v534
      %v536 = vsel %vm362, %v535, 0.0
      %537 = vadd.xlane.f32.xlu0 %v536
      %v538 = vpop.xlane.xlu0 %537
      %vm539 = vcmask 7168
      %540 = vst.msk [vmem:[%s261] sm:$0xff] %vm539, %v538
      %v541 = vld [vmem:[%s3 + $0xa0] sm:$0xff]
      %v542 = vld [vmem:[%s3 + $0xa8] sm:$0xff]
      %v543 = vld [vmem:[%s3 + $0xb0] sm:$0xff]
      %v544 = vld [vmem:[%s3 + $0xb8] sm:$0xff]
      %545 = vmatprep.subr.mxu0 0.0
      %546 = vmatpush1.msra.mxu0 0.0
      %547 = vmatprep.subr.mxu0 0.0
      %548 = vmatpush1.msra.mxu0 0.0
      %549 = vmatprep.subr.mxu0 0.0
      %550 = vmatpush1.msra.mxu0 0.0
      %551 = vmatprep.subr.mxu0 0.0
      %552 = vmatpush1.msra.mxu0 0.0
      %553 = vmatprep.subr.mxu0 0.0
      %554 = vmatpush1.msra.mxu0 0.0
      %555 = vmatprep.subr.mxu0 0.0
      %556 = vmatpush1.msra.mxu0 0.0
      %557 = vmatprep.subr.mxu0 0.0
      %558 = vmatpush1.msra.mxu0 0.0
      %559 = vmatprep.subr.mxu0 0.0
      %560 = vmatpush1.msra.mxu0 0.0
      %561 = vmatprep.subr.mxu0 0.0
      %562 = vmatpush1.msra.mxu0 0.0
      %563 = vmatprep.subr.mxu0 0.0
      %564 = vmatpush1.msra.mxu0 0.0
      %565 = vmatprep.subr.mxu0 0.0
      %566 = vmatpush1.msra.mxu0 0.0
      %567 = vmatprep.subr.mxu0 0.0
      %568 = vmatpush1.msra.mxu0 0.0
      %569 = vmatprep.subr.mxu0 0.0
      %570 = vmatpush1.msra.mxu0 %v544
      %571 = vmatprep.subr.mxu0 0.0
      %572 = vmatpush1.msra.mxu0 %v543
      %573 = vmatprep.subr.mxu0 0.0
      %574 = vmatpush1.msra.mxu0 %v542
      %575 = vmatprep.subr.mxu0 0.0
      %576 = vmatpush1.msra.mxu0 %v541
      %577 = vmatprep.subr.mxu0 0.0
      %578 = vmatpush2.msra.mxu0 0.0
      %579 = vmatprep.subr.mxu0 0.0
      %580 = vmatpush2.msra.mxu0 0.0
      %581 = vmatprep.subr.mxu0 0.0
      %582 = vmatpush2.msra.mxu0 0.0
      %583 = vmatprep.subr.mxu0 0.0
      %584 = vmatpush2.msra.mxu0 0.0
      %585 = vmatprep.subr.mxu0 0.0
      %586 = vmatpush2.msra.mxu0 0.0
      %587 = vmatprep.subr.mxu0 0.0
      %588 = vmatpush2.msra.mxu0 0.0
      %589 = vmatprep.subr.mxu0 0.0
      %590 = vmatpush2.msra.mxu0 0.0
      %591 = vmatprep.subr.mxu0 0.0
      %592 = vmatpush2.msra.mxu0 0.0
      %593 = vmatprep.subr.mxu0 0.0
      %594 = vmatpush2.msra.mxu0 0.0
      %595 = vmatprep.subr.mxu0 0.0
      %596 = vmatpush2.msra.mxu0 0.0
      %597 = vmatprep.subr.mxu0 0.0
      %598 = vmatpush2.msra.mxu0 0.0
      %599 = vmatprep.subr.mxu0 0.0
      %600 = vmatpush2.msra.mxu0 0.0
      %601 = vmatprep.subr.mxu0 0.0
      %602 = vmatpush2.msra.mxu0 0.0
      %603 = vmatprep.subr.mxu0 0.0
      %604 = vmatpush2.msra.mxu0 0.0
      %605 = vmatprep.subr.mxu0 0.0
      %606 = vmatpush2.msra.mxu0 0.0
      %607 = vmatprep.subr.mxu0 0.0
      %608 = vmatpush2.msra.mxu0 0.0
      %609 = vmatprep.mubr.f32.mxu0 0.0
      %610 = vmatmul.mubr.f32.gmra.mxu0 %v274
      %v611 = vpop.f32.mrf.mxu0
      %v612 = vadd.f32 0.0, %v611
      %v613 = vpop.f32.mrf.mxu0
      %614 = vdwg.mxu0
      %v615 = vld [vmem:[%s3 + $0xc0] sm:$0xff]
      %v616 = vld [vmem:[%s3 + $0xc8] sm:$0xff]
      %v617 = vld [vmem:[%s3 + $0xd0] sm:$0xff]
      %v618 = vld [vmem:[%s3 + $0xd8] sm:$0xff]
      %619 = vmatprep.subr.mxu0 0.0
      %620 = vmatpush1.msra.mxu0 0.0
      %621 = vmatprep.subr.mxu0 0.0
      %622 = vmatpush1.msra.mxu0 0.0
      %623 = vmatprep.subr.mxu0 0.0
      %624 = vmatpush1.msra.mxu0 0.0
      %625 = vmatprep.subr.mxu0 0.0
      %626 = vmatpush1.msra.mxu0 0.0
      %627 = vmatprep.subr.mxu0 0.0
      %628 = vmatpush1.msra.mxu0 0.0
      %629 = vmatprep.subr.mxu0 0.0
      %630 = vmatpush1.msra.mxu0 0.0
      %631 = vmatprep.subr.mxu0 0.0
      %632 = vmatpush1.msra.mxu0 0.0
      %633 = vmatprep.subr.mxu0 0.0
      %634 = vmatpush1.msra.mxu0 0.0
      %635 = vmatprep.subr.mxu0 0.0
      %636 = vmatpush1.msra.mxu0 0.0
      %637 = vmatprep.subr.mxu0 0.0
      %638 = vmatpush1.msra.mxu0 0.0
      %639 = vmatprep.subr.mxu0 0.0
      %640 = vmatpush1.msra.mxu0 0.0
      %641 = vmatprep.subr.mxu0 0.0
      %642 = vmatpush1.msra.mxu0 0.0
      %643 = vmatprep.subr.mxu0 0.0
      %644 = vmatpush1.msra.mxu0 %v618
      %645 = vmatprep.subr.mxu0 0.0
      %646 = vmatpush1.msra.mxu0 %v617
      %647 = vmatprep.subr.mxu0 0.0
      %648 = vmatpush1.msra.mxu0 %v616
      %649 = vmatprep.subr.mxu0 0.0
      %650 = vmatpush1.msra.mxu0 %v615
      %651 = vmatprep.subr.mxu0 0.0
      %652 = vmatpush2.msra.mxu0 0.0
      %653 = vmatprep.subr.mxu0 0.0
      %654 = vmatpush2.msra.mxu0 0.0
      %655 = vmatprep.subr.mxu0 0.0
      %656 = vmatpush2.msra.mxu0 0.0
      %657 = vmatprep.subr.mxu0 0.0
      %658 = vmatpush2.msra.mxu0 0.0
      %659 = vmatprep.subr.mxu0 0.0
      %660 = vmatpush2.msra.mxu0 0.0
      %661 = vmatprep.subr.mxu0 0.0
      %662 = vmatpush2.msra.mxu0 0.0
      %663 = vmatprep.subr.mxu0 0.0
      %664 = vmatpush2.msra.mxu0 0.0
      %665 = vmatprep.subr.mxu0 0.0
      %666 = vmatpush2.msra.mxu0 0.0
      %667 = vmatprep.subr.mxu0 0.0
      %668 = vmatpush2.msra.mxu0 0.0
      %669 = vmatprep.subr.mxu0 0.0
      %670 = vmatpush2.msra.mxu0 0.0
      %671 = vmatprep.subr.mxu0 0.0
      %672 = vmatpush2.msra.mxu0 0.0
      %673 = vmatprep.subr.mxu0 0.0
      %674 = vmatpush2.msra.mxu0 0.0
      %675 = vmatprep.subr.mxu0 0.0
      %676 = vmatpush2.msra.mxu0 0.0
      %677 = vmatprep.subr.mxu0 0.0
      %678 = vmatpush2.msra.mxu0 0.0
      %679 = vmatprep.subr.mxu0 0.0
      %680 = vmatpush2.msra.mxu0 0.0
      %681 = vmatprep.subr.mxu0 0.0
      %682 = vmatpush2.msra.mxu0 0.0
      %683 = vmatprep.mubr.f32.mxu0 0.0
      %684 = vmatmul.mubr.f32.gmra.mxu0 %v274
      %v685 = vpop.f32.mrf.mxu0
      %v686 = vadd.f32 0.0, %v685
      %v687 = vpop.f32.mrf.mxu0
      %688 = vdwg.mxu0
      %v689 = vlaneseq
      %v690 = vand.u32 %v689, 127
      %691 = vset.pattern.permute.xlu0 0
      %692 = vperm.xlu0 %691, %v265
      %v693 = vpop.permute.xlu0 %692
      %694 = vset.pattern.permute.xlu0 0
      %695 = vperm.xlu0 %694, %v266
      %v696 = vpop.permute.xlu0 %695
      %vm697 = vcmp.eq.s32.totalorder %v690, %v693
      %vm698 = vcmp.eq.s32.totalorder %v690, %v696
      %v699 = vadd.s32 %v265, 8
      %v700 = vadd.s32 %v266, 8
      %701 = vset.pattern.permute.xlu0 1
      %702 = vperm.xlu0 %701, %v699
      %v703 = vpop.permute.xlu0 %702
      %704 = vset.pattern.permute.xlu0 1
      %705 = vperm.xlu0 %704, %v700
      %v706 = vpop.permute.xlu0 %705
      %vm707 = vcmp.eq.s32.totalorder %v690, %v703
      %vm708 = vcmp.eq.s32.totalorder %v690, %v706
      %vm709 = vmor %vm697, %vm707
      %vm710 = vmor %vm698, %vm708
      %v711 = vsel %vm709, 1, 0
      %v712 = vsel %vm710, 1, 0
      %v713 = vcvt.s32.f32 %v711
      %v714 = vcvt.s32.f32 %v712
      %v715 = vld [vmem:[%s4 + $0xa0] sm:$0xff]
      %v716 = vld [vmem:[%s4 + $0xa8] sm:$0xff]
      %v717 = vld [vmem:[%s4 + $0xb0] sm:$0xff]
      %v718 = vld [vmem:[%s4 + $0xb8] sm:$0xff]
      %vm719 = vcmp.lt.s32.totalorder %v690, 6
      %v720 = vsub.f32 0.0, %v717
      %v721 = vsub.f32 0.0, %v718
      %723 = vset.pattern.permute.xlu0 0
      %724 = vperm.xlu0 %723, %v263
      %v725 = vpop.permute.xlu0 %724
      %728 = vset.pattern.permute.xlu0 0
      %729 = vperm.xlu0 %728, %v264
      %v730 = vpop.permute.xlu0 %729
      %v732 = vsub.f32 %v725, %v715
      %v733 = vsub.f32 %v730, %v716
      %v734 = vmul.f32 %v732, %v732
      %v735 = vmul.f32 %v733, %v733
      %v736 = vmul.f32 %v720, %v734
      %v737 = vmul.f32 %v721, %v735
      %v738 = vmul.f32 %v736, 1.442695
      %v739 = vpow.pop %v738
      %v740 = vmul.f32 %v737, 1.442695
      %v741 = vpow.pop %v740
      %v742 = vsel %vm719, %v739, 0.0
      %v743 = vsel %vm719, %v741, 0.0
      %v744 = vld [vmem:[%s3 + $0xe0] sm:$0xff]
      %v745 = vld [vmem:[%s3 + $0xe8] sm:$0xff]
      %v746 = vld [vmem:[%s3 + $0xf0] sm:$0xff]
      %v747 = vld [vmem:[%s3 + $0xf8] sm:$0xff]
      %v748 = vld [vmem:[%s3 + $0x100] sm:$0xff]
      %v749 = vld [vmem:[%s3 + $0x108] sm:$0xff]
      %v750 = vld [vmem:[%s3 + $0x110] sm:$0xff]
      %v751 = vld [vmem:[%s3 + $0x118] sm:$0xff]
      %v753 = vsel %vm362, %v742, 0
      %v756 = vsel %vm362, %v743, 0
      %758 = vmatprep.subr.mxu0 0.0
      %759 = vmatpush1.msra.mxu0 0.0
      %760 = vmatprep.subr.mxu0 0.0
      %761 = vmatpush1.msra.mxu0 0.0
      %762 = vmatprep.subr.mxu0 0.0
      %763 = vmatpush1.msra.mxu0 0.0
      %764 = vmatprep.subr.mxu0 0.0
      %765 = vmatpush1.msra.mxu0 0.0
      %766 = vmatprep.subr.mxu0 0.0
      %767 = vmatpush1.msra.mxu0 0.0
      %768 = vmatprep.subr.mxu0 0.0
      %769 = vmatpush1.msra.mxu0 0.0
      %770 = vmatprep.subr.mxu0 0.0
      %771 = vmatpush1.msra.mxu0 0.0
      %772 = vmatprep.subr.mxu0 0.0
      %773 = vmatpush1.msra.mxu0 0.0
      %774 = vmatprep.subr.mxu0 0.0
      %775 = vmatpush1.msra.mxu0 %v751
      %776 = vmatprep.subr.mxu0 0.0
      %777 = vmatpush1.msra.mxu0 %v750
      %778 = vmatprep.subr.mxu0 0.0
      %779 = vmatpush1.msra.mxu0 %v749
      %780 = vmatprep.subr.mxu0 0.0
      %781 = vmatpush1.msra.mxu0 %v748
      %782 = vmatprep.subr.mxu0 0.0
      %783 = vmatpush1.msra.mxu0 %v747
      %784 = vmatprep.subr.mxu0 0.0
      %785 = vmatpush1.msra.mxu0 %v746
      %786 = vmatprep.subr.mxu0 0.0
      %787 = vmatpush1.msra.mxu0 %v745
      %788 = vmatprep.subr.mxu0 0.0
      %789 = vmatpush1.msra.mxu0 %v744
      %790 = vmatprep.subr.mxu0 0.0
      %791 = vmatpush2.msra.mxu0 0.0
      %792 = vmatprep.subr.mxu0 0.0
      %793 = vmatpush2.msra.mxu0 0.0
      %794 = vmatprep.subr.mxu0 0.0
      %795 = vmatpush2.msra.mxu0 0.0
      %796 = vmatprep.subr.mxu0 0.0
      %797 = vmatpush2.msra.mxu0 0.0
      %798 = vmatprep.subr.mxu0 0.0
      %799 = vmatpush2.msra.mxu0 0.0
      %800 = vmatprep.subr.mxu0 0.0
      %801 = vmatpush2.msra.mxu0 0.0
      %802 = vmatprep.subr.mxu0 0.0
      %803 = vmatpush2.msra.mxu0 0.0
      %804 = vmatprep.subr.mxu0 0.0
      %805 = vmatpush2.msra.mxu0 0.0
      %806 = vmatprep.subr.mxu0 0.0
      %807 = vmatpush2.msra.mxu0 0.0
      %808 = vmatprep.subr.mxu0 0.0
      %809 = vmatpush2.msra.mxu0 0.0
      %810 = vmatprep.subr.mxu0 0.0
      %811 = vmatpush2.msra.mxu0 0.0
      %812 = vmatprep.subr.mxu0 0.0
      %813 = vmatpush2.msra.mxu0 0.0
      %814 = vmatprep.subr.mxu0 0.0
      %815 = vmatpush2.msra.mxu0 0.0
      %816 = vmatprep.subr.mxu0 0.0
      %817 = vmatpush2.msra.mxu0 0.0
      %818 = vmatprep.subr.mxu0 0.0
      %819 = vmatpush2.msra.mxu0 0.0
      %820 = vmatprep.subr.mxu0 0.0
      %821 = vmatpush2.msra.mxu0 0.0
      %822 = vmatprep.mubr.f32.mxu0 0.0
      %823 = vmatmul.mubr.f32.gmra.mxu0 %v753
      %v824 = vpop.f32.mrf.mxu0
      %v825 = vadd.f32 0.0, %v824
      %v826 = vpop.f32.mrf.mxu0
      %827 = vmatprep.mubr.f32.mxu0 0.0
      %828 = vmatmul.mubr.f32.gmra.mxu0 %v756
      %v829 = vpop.f32.mrf.mxu0
      %v830 = vadd.f32 0.0, %v829
      %v831 = vpop.f32.mrf.mxu0
      %832 = vdwg.mxu0
      %vm833 = vcmask 130048
      %v835 = vsel %vm833, %v713, 0
      %v838 = vsel %vm833, %v714, 0
      %840 = vmatprep.subr.mxu0 0.0
      %841 = vmatpush1.msra.mxu0 0.0
      %842 = vmatprep.subr.mxu0 0.0
      %843 = vmatpush1.msra.mxu0 0.0
      %844 = vmatprep.subr.mxu0 0.0
      %845 = vmatpush1.msra.mxu0 0.0
      %846 = vmatprep.subr.mxu0 0.0
      %847 = vmatpush1.msra.mxu0 0.0
      %848 = vmatprep.subr.mxu0 0.0
      %849 = vmatpush1.msra.mxu0 0.0
      %850 = vmatprep.subr.mxu0 0.0
      %851 = vmatpush1.msra.mxu0 0.0
      %852 = vmatprep.subr.mxu0 0.0
      %853 = vmatpush1.msra.mxu0 0.0
      %854 = vmatprep.subr.mxu0 0.0
      %855 = vmatpush1.msra.mxu0 0.0
      %856 = vmatprep.subr.mxu0 0.0
      %857 = vmatpush1.msra.mxu0 0.0
      %858 = vmatprep.subr.mxu0 0.0
      %859 = vmatpush1.msra.mxu0 0.0
      %860 = vmatprep.subr.mxu0 0.0
      %861 = vmatpush1.msra.mxu0 0.0
      %862 = vmatprep.subr.mxu0 0.0
      %863 = vmatpush1.msra.mxu0 0.0
      %864 = vmatprep.subr.mxu0 0.0
      %865 = vmatpush1.msra.mxu0 0.0
      %866 = vmatprep.subr.mxu0 0.0
      %867 = vmatpush1.msra.mxu0 0.0
      %868 = vmatprep.subr.mxu0 0.0
      %869 = vmatpush1.msra.mxu0 %v686
      %870 = vmatprep.subr.mxu0 0.0
      %871 = vmatpush1.msra.mxu0 %v612
      %872 = vmatprep.subr.mxu0 0.0
      %873 = vmatpush2.msra.mxu0 0.0
      %874 = vmatprep.subr.mxu0 0.0
      %875 = vmatpush2.msra.mxu0 0.0
      %876 = vmatprep.subr.mxu0 0.0
      %877 = vmatpush2.msra.mxu0 0.0
      %878 = vmatprep.subr.mxu0 0.0
      %879 = vmatpush2.msra.mxu0 0.0
      %880 = vmatprep.subr.mxu0 0.0
      %881 = vmatpush2.msra.mxu0 0.0
      %882 = vmatprep.subr.mxu0 0.0
      %883 = vmatpush2.msra.mxu0 0.0
      %884 = vmatprep.subr.mxu0 0.0
      %885 = vmatpush2.msra.mxu0 0.0
      %886 = vmatprep.subr.mxu0 0.0
      %887 = vmatpush2.msra.mxu0 0.0
      %888 = vmatprep.subr.mxu0 0.0
      %889 = vmatpush2.msra.mxu0 0.0
      %890 = vmatprep.subr.mxu0 0.0
      %891 = vmatpush2.msra.mxu0 0.0
      %892 = vmatprep.subr.mxu0 0.0
      %893 = vmatpush2.msra.mxu0 0.0
      %894 = vmatprep.subr.mxu0 0.0
      %895 = vmatpush2.msra.mxu0 0.0
      %896 = vmatprep.subr.mxu0 0.0
      %897 = vmatpush2.msra.mxu0 0.0
      %898 = vmatprep.subr.mxu0 0.0
      %899 = vmatpush2.msra.mxu0 0.0
      %900 = vmatprep.subr.mxu0 0.0
      %901 = vmatpush2.msra.mxu0 0.0
      %902 = vmatprep.subr.mxu0 0.0
      %903 = vmatpush2.msra.mxu0 0.0
      %904 = vmatprep.mubr.f32.mxu0 0.0
      %905 = vmatmul.mubr.f32.gmra.mxu0 %v835
      %v906 = vpop.f32.mrf.mxu0
      %v907 = vadd.f32 %v825, %v906
      %v908 = vpop.f32.mrf.mxu0
      %909 = vmatprep.mubr.f32.mxu0 0.0
      %910 = vmatmul.mubr.f32.gmra.mxu0 %v838
      %v911 = vpop.f32.mrf.mxu0
      %v912 = vadd.f32 %v830, %v911
      %v913 = vpop.f32.mrf.mxu0
      %914 = vdwg.mxu0
      %v915 = vld [vmem:[%s4 + $0x50] sm:$0xff]
      %v916 = vld [vmem:[%s4 + $0x58] sm:$0xff]
      %v917 = vadd.f32 %v907, %v915
      %v918 = vadd.f32 %v912, %v916
      %v919 = vxor.u32 %v917, 2147483648
      %v920 = vxor.u32 %v918, 2147483648
      %v921 = vmul.f32 %v919, 1.442695
      %v922 = vpow.pop %v921
      %v923 = vmul.f32 %v920, 1.442695
      %v924 = vpow.pop %v923
      %v925 = vadd.f32 %v922, 1.0
      %v926 = vadd.f32 %v924, 1.0
      %v927 = vrcp.pop %v925
      %v928 = vmul.f32 1.0, %v927
      %v929 = vrcp.pop %v926
      %v930 = vmul.f32 1.0, %v929
      %v931 = vmul.f32 %v917, %v928
      %v932 = vmul.f32 %v918, %v930
      %v933 = vld [vmem:[%s3 + $0x120] sm:$0xff]
      %v934 = vld [vmem:[%s3 + $0x128] sm:$0xff]
      %v935 = vld [vmem:[%s3 + $0x130] sm:$0xff]
      %v936 = vld [vmem:[%s3 + $0x138] sm:$0xff]
      %v937 = vld [vmem:[%s3 + $0x140] sm:$0xff]
      %v938 = vld [vmem:[%s3 + $0x148] sm:$0xff]
      %v939 = vld [vmem:[%s3 + $0x150] sm:$0xff]
      %v940 = vld [vmem:[%s3 + $0x158] sm:$0xff]
      %v941 = vld [vmem:[%s4 + $0x60] sm:$0xff]
      %v942 = vld [vmem:[%s4 + $0x68] sm:$0xff]
      %v944 = vsel %vm362, %v931, 0
      %v947 = vsel %vm362, %v932, 0
      %949 = vmatprep.subr.mxu0 0.0
      %950 = vmatpush1.msra.mxu0 0.0
      %951 = vmatprep.subr.mxu0 0.0
      %952 = vmatpush1.msra.mxu0 0.0
      %953 = vmatprep.subr.mxu0 0.0
      %954 = vmatpush1.msra.mxu0 0.0
      %955 = vmatprep.subr.mxu0 0.0
      %956 = vmatpush1.msra.mxu0 0.0
      %957 = vmatprep.subr.mxu0 0.0
      %958 = vmatpush1.msra.mxu0 0.0
      %959 = vmatprep.subr.mxu0 0.0
      %960 = vmatpush1.msra.mxu0 0.0
      %961 = vmatprep.subr.mxu0 0.0
      %962 = vmatpush1.msra.mxu0 0.0
      %963 = vmatprep.subr.mxu0 0.0
      %964 = vmatpush1.msra.mxu0 0.0
      %965 = vmatprep.subr.mxu0 0.0
      %966 = vmatpush1.msra.mxu0 %v940
      %967 = vmatprep.subr.mxu0 0.0
      %968 = vmatpush1.msra.mxu0 %v939
      %969 = vmatprep.subr.mxu0 0.0
      %970 = vmatpush1.msra.mxu0 %v938
      %971 = vmatprep.subr.mxu0 0.0
      %972 = vmatpush1.msra.mxu0 %v937
      %973 = vmatprep.subr.mxu0 0.0
      %974 = vmatpush1.msra.mxu0 %v936
      %975 = vmatprep.subr.mxu0 0.0
      %976 = vmatpush1.msra.mxu0 %v935
      %977 = vmatprep.subr.mxu0 0.0
      %978 = vmatpush1.msra.mxu0 %v934
      %979 = vmatprep.subr.mxu0 0.0
      %980 = vmatpush1.msra.mxu0 %v933
      %981 = vmatprep.subr.mxu0 0.0
      %982 = vmatpush2.msra.mxu0 0.0
      %983 = vmatprep.subr.mxu0 0.0
      %984 = vmatpush2.msra.mxu0 0.0
      %985 = vmatprep.subr.mxu0 0.0
      %986 = vmatpush2.msra.mxu0 0.0
      %987 = vmatprep.subr.mxu0 0.0
      %988 = vmatpush2.msra.mxu0 0.0
      %989 = vmatprep.subr.mxu0 0.0
      %990 = vmatpush2.msra.mxu0 0.0
      %991 = vmatprep.subr.mxu0 0.0
      %992 = vmatpush2.msra.mxu0 0.0
      %993 = vmatprep.subr.mxu0 0.0
      %994 = vmatpush2.msra.mxu0 0.0
      %995 = vmatprep.subr.mxu0 0.0
      %996 = vmatpush2.msra.mxu0 0.0
      %997 = vmatprep.subr.mxu0 0.0
      %998 = vmatpush2.msra.mxu0 0.0
      %999 = vmatprep.subr.mxu0 0.0
      %1000 = vmatpush2.msra.mxu0 0.0
      %1001 = vmatprep.subr.mxu0 0.0
      %1002 = vmatpush2.msra.mxu0 0.0
      %1003 = vmatprep.subr.mxu0 0.0
      %1004 = vmatpush2.msra.mxu0 0.0
      %1005 = vmatprep.subr.mxu0 0.0
      %1006 = vmatpush2.msra.mxu0 0.0
      %1007 = vmatprep.subr.mxu0 0.0
      %1008 = vmatpush2.msra.mxu0 0.0
      %1009 = vmatprep.subr.mxu0 0.0
      %1010 = vmatpush2.msra.mxu0 0.0
      %1011 = vmatprep.subr.mxu0 0.0
      %1012 = vmatpush2.msra.mxu0 0.0
      %1013 = vmatprep.mubr.f32.mxu0 0.0
      %1014 = vmatmul.mubr.f32.gmra.mxu0 %v944
      %v1015 = vpop.f32.mrf.mxu0
      %v1016 = vadd.f32 %v941, %v1015
      %v1017 = vpop.f32.mrf.mxu0
      %1018 = vmatprep.mubr.f32.mxu0 0.0
      %1019 = vmatmul.mubr.f32.gmra.mxu0 %v947
      %v1020 = vpop.f32.mrf.mxu0
      %v1021 = vadd.f32 %v942, %v1020
      %v1022 = vpop.f32.mrf.mxu0
      %1023 = vdwg.mxu0
      %v1024 = vxor.u32 %v1016, 2147483648
      %v1025 = vxor.u32 %v1021, 2147483648
      %v1026 = vmul.f32 %v1024, 1.442695
      %v1027 = vpow.pop %v1026
      %v1028 = vmul.f32 %v1025, 1.442695
      %v1029 = vpow.pop %v1028
      %v1030 = vadd.f32 %v1027, 1.0
      %v1031 = vadd.f32 %v1029, 1.0
      %v1032 = vrcp.pop %v1030
      %v1033 = vmul.f32 1.0, %v1032
      %v1034 = vrcp.pop %v1031
      %v1035 = vmul.f32 1.0, %v1034
      %v1036 = vmul.f32 %v1016, %v1033
      %v1037 = vmul.f32 %v1021, %v1035
      %v1038 = vld [vmem:[%s3 + $0x160] sm:$0xff]
      %v1039 = vld [vmem:[%s3 + $0x168] sm:$0xff]
      %v1040 = vld [vmem:[%s3 + $0x170] sm:$0xff]
      %v1041 = vld [vmem:[%s3 + $0x178] sm:$0xff]
      %v1042 = vld [vmem:[%s3 + $0x180] sm:$0xff]
      %v1043 = vld [vmem:[%s3 + $0x188] sm:$0xff]
      %v1044 = vld [vmem:[%s3 + $0x190] sm:$0xff]
      %v1045 = vld [vmem:[%s3 + $0x198] sm:$0xff]
      %v1046 = vld [vmem:[%s4 + $0x70] sm:$0xff]
      %v1047 = vld [vmem:[%s4 + $0x78] sm:$0xff]
      %v1049 = vsel %vm362, %v1036, 0
      %v1052 = vsel %vm362, %v1037, 0
      %1054 = vmatprep.subr.mxu0 0.0
      %1055 = vmatpush1.msra.mxu0 0.0
      %1056 = vmatprep.subr.mxu0 0.0
      %1057 = vmatpush1.msra.mxu0 0.0
      %1058 = vmatprep.subr.mxu0 0.0
      %1059 = vmatpush1.msra.mxu0 0.0
      %1060 = vmatprep.subr.mxu0 0.0
      %1061 = vmatpush1.msra.mxu0 0.0
      %1062 = vmatprep.subr.mxu0 0.0
      %1063 = vmatpush1.msra.mxu0 0.0
      %1064 = vmatprep.subr.mxu0 0.0
      %1065 = vmatpush1.msra.mxu0 0.0
      %1066 = vmatprep.subr.mxu0 0.0
      %1067 = vmatpush1.msra.mxu0 0.0
      %1068 = vmatprep.subr.mxu0 0.0
      %1069 = vmatpush1.msra.mxu0 0.0
      %1070 = vmatprep.subr.mxu0 0.0
      %1071 = vmatpush1.msra.mxu0 %v1045
      %1072 = vmatprep.subr.mxu0 0.0
      %1073 = vmatpush1.msra.mxu0 %v1044
      %1074 = vmatprep.subr.mxu0 0.0
      %1075 = vmatpush1.msra.mxu0 %v1043
      %1076 = vmatprep.subr.mxu0 0.0
      %1077 = vmatpush1.msra.mxu0 %v1042
      %1078 = vmatprep.subr.mxu0 0.0
      %1079 = vmatpush1.msra.mxu0 %v1041
      %1080 = vmatprep.subr.mxu0 0.0
      %1081 = vmatpush1.msra.mxu0 %v1040
      %1082 = vmatprep.subr.mxu0 0.0
      %1083 = vmatpush1.msra.mxu0 %v1039
      %1084 = vmatprep.subr.mxu0 0.0
      %1085 = vmatpush1.msra.mxu0 %v1038
      %1086 = vmatprep.subr.mxu0 0.0
      %1087 = vmatpush2.msra.mxu0 0.0
      %1088 = vmatprep.subr.mxu0 0.0
      %1089 = vmatpush2.msra.mxu0 0.0
      %1090 = vmatprep.subr.mxu0 0.0
      %1091 = vmatpush2.msra.mxu0 0.0
      %1092 = vmatprep.subr.mxu0 0.0
      %1093 = vmatpush2.msra.mxu0 0.0
      %1094 = vmatprep.subr.mxu0 0.0
      %1095 = vmatpush2.msra.mxu0 0.0
      %1096 = vmatprep.subr.mxu0 0.0
      %1097 = vmatpush2.msra.mxu0 0.0
      %1098 = vmatprep.subr.mxu0 0.0
      %1099 = vmatpush2.msra.mxu0 0.0
      %1100 = vmatprep.subr.mxu0 0.0
      %1101 = vmatpush2.msra.mxu0 0.0
      %1102 = vmatprep.subr.mxu0 0.0
      %1103 = vmatpush2.msra.mxu0 0.0
      %1104 = vmatprep.subr.mxu0 0.0
      %1105 = vmatpush2.msra.mxu0 0.0
      %1106 = vmatprep.subr.mxu0 0.0
      %1107 = vmatpush2.msra.mxu0 0.0
      %1108 = vmatprep.subr.mxu0 0.0
      %1109 = vmatpush2.msra.mxu0 0.0
      %1110 = vmatprep.subr.mxu0 0.0
      %1111 = vmatpush2.msra.mxu0 0.0
      %1112 = vmatprep.subr.mxu0 0.0
      %1113 = vmatpush2.msra.mxu0 0.0
      %1114 = vmatprep.subr.mxu0 0.0
      %1115 = vmatpush2.msra.mxu0 0.0
      %1116 = vmatprep.subr.mxu0 0.0
      %1117 = vmatpush2.msra.mxu0 0.0
      %1118 = vmatprep.mubr.f32.mxu0 0.0
      %1119 = vmatmul.mubr.f32.gmra.mxu0 %v1049
      %v1120 = vpop.f32.mrf.mxu0
      %v1121 = vadd.f32 %v1046, %v1120
      %v1122 = vpop.f32.mrf.mxu0
      %1123 = vmatprep.mubr.f32.mxu0 0.0
      %1124 = vmatmul.mubr.f32.gmra.mxu0 %v1052
      %v1125 = vpop.f32.mrf.mxu0
      %v1126 = vadd.f32 %v1047, %v1125
      %v1127 = vpop.f32.mrf.mxu0
      %1128 = vdwg.mxu0
      %v1129 = vxor.u32 %v1121, 2147483648
      %v1130 = vxor.u32 %v1126, 2147483648
      %v1131 = vmul.f32 %v1129, 1.442695
      %v1132 = vpow.pop %v1131
      %v1133 = vmul.f32 %v1130, 1.442695
      %v1134 = vpow.pop %v1133
      %v1135 = vadd.f32 %v1132, 1.0
      %v1136 = vadd.f32 %v1134, 1.0
      %v1137 = vrcp.pop %v1135
      %v1138 = vmul.f32 1.0, %v1137
      %v1139 = vrcp.pop %v1136
      %v1140 = vmul.f32 1.0, %v1139
      %v1141 = vmul.f32 %v1121, %v1138
      %v1142 = vmul.f32 %v1126, %v1140
      %v1143 = vld [vmem:[%s4 + $0x80] sm:$0xff]
      %v1144 = vld [vmem:[%s4 + $0x88] sm:$0xff]
      %v1145 = vmul.f32 %v1141, %v1143
      %v1146 = vmul.f32 %v1142, %v1144
      %v1147 = vld [vmem:[%s4 + $0x90] sm:$0xff]
      %v1148 = vld [vmem:[%s4 + $0x98] sm:$0xff]
      %v1149 = vadd.f32 %v1145, %v1147
      %v1150 = vadd.f32 %v1146, %v1148
      %v1151 = vsel %vm362, %v1149, 0.0
      %1152 = vadd.xlane.f32.xlu0 %v1151
      %v1153 = vpop.xlane.xlu0 %1152
      %v1154 = vsel %vm362, %v1150, 0.0
      %1155 = vadd.xlane.f32.xlu0 %v1154
      %v1156 = vpop.xlane.xlu0 %1155
      %v1157 = vmul.f32 %v263, -2.7124
      %v1158 = vmul.f32 %v264, -2.7124
      %v1159 = vmul.f32 %v1157, 1.442695
      %v1160 = vpow.pop %v1159
      %v1161 = vmul.f32 %v1158, 1.442695
      %v1162 = vpow.pop %v1161
      %v1163 = vmul.f32 %v1160, 75.9645
      %v1164 = vmul.f32 %v1162, 75.9645
      %vm1165 = vcmp.gt.f32.partialorder %v263, 1.7
      %vm1166 = vcmp.gt.f32.partialorder %v264, 1.7
      %v1167 = vsel %vm1165, 1, 0
      %v1168 = vsel %vm1166, 1, 0
      %v1169 = vcvt.s32.f32 %v1167
      %v1170 = vcvt.s32.f32 %v1168
      %v1171 = vmul.f32 %v1163, %v1169
      %v1172 = vmul.f32 %v1164, %v1170
      %v1173 = vadd.f32 %v1153, %v1171
      %v1174 = vadd.f32 %v1156, %v1172
      %1175 = vst.msk [vmem:[%s261 + $0x8] sm:$0xff] %vm539, %v1173
      %1176 = vst.msk [vmem:[%s261 + $0x10] sm:$0xff] %vm539, %v1174
      %p1177 = scmp.lt.s32.totalorder %s16, 3
      %s1178 = scalar_select %p1177, %s16, 3
      %s1179 = smul.addr %s1178, 3
      %s1180 = smul.addr %s1179, 8
      %s1181 = scalar_lea.vmem %s5, %s1180
      // Predicated region
      $region41: #{phys_interaction_net_forward.1} parent=39 // pred_check
        %p1182 = pneg %p154
      $region42: #{phys_interaction_net_forward.1} parent=39 // pred_check_branch
        %1184 = sbr.rel (%p1182) target = $region44
      $region43: #{phys_interaction_net_forward.1} parent=39 // pred_region
        _
      $region44: #{phys_interaction_net_forward.1} parent=39 // pred_fallthru
        _
    $region40: #{phys_interaction_net_forward.1} parent=5 // pred_fallthru
      _
    %p1185 = scmp.le.s32.totalorder 2, %s11
    // Predicated region
    $region45: #{phys_interaction_net_forward.1} parent=5 // pred_check
      %p1186 = pneg %p1185
    $region46: #{phys_interaction_net_forward.1} parent=5 // pred_check_branch
      %1188 = sbr.rel (%p1186) target = $region48
    $region47: #{phys_interaction_net_forward.1} parent=5 // pred_region
      %s1189 = ssub.s32 %s11, 2
      // Predicated region
      $region49: #{phys_interaction_net_forward.1} parent=47 // pred_check
        %p1190 = pneg %p160
      $region50: #{phys_interaction_net_forward.1} parent=47 // pred_check_branch
        %1192 = sbr.rel (%p1190) target = $region52
      $region51: #{phys_interaction_net_forward.1} parent=47 // pred_region
        %p1193 = scmp.lt.s32.totalorder %s17, 3
        %s1194 = scalar_select %p1193, %s17, 3
        %s1195 = smul.addr %s1194, 3
        %s1196 = smul.addr %s1195, 8
        %s1197 = scalar_lea.vmem %s5, %s1196
      $region52: #{phys_interaction_net_forward.1} parent=47 // pred_fallthru
        _
    $region48: #{phys_interaction_net_forward.1} parent=5 // pred_fallthru
      _
  $region6: #{phys_interaction_net_forward.1} parent=0 // loop_footer
    %s15 = sadd.s32 1, %s11
  $region7: #{phys_interaction_net_forward.1} parent=0 // loop_footer_branch
    %10 = sbr.rel target = $region3
  $region8: #{phys_interaction_net_forward.1} parent=0 // loop_exit
    _

</llo_original>
